<compile_context>
chip_gen: v7x
topology: tpu7x:2x2x1
jax: 0.10.0
libtpu: 0.0.40
codegen_flags: <defaults>
</compile_context>

<pallas_src>
import math
from functools import partial

import jax
import jax.numpy as jnp
from jax import lax
from jax.experimental import pallas as pl
from jax.experimental.pallas import tpu as pltpu


# ----------------------------------------------------------------------------
# Kernel
# ----------------------------------------------------------------------------
def _ln(x, gamma, beta, eps):
    # PyTorch LayerNorm: biased variance over the last dim, f32 math.
    mu = jnp.mean(x, axis=-1, keepdims=True)
    var = jnp.mean(jnp.square(x - mu), axis=-1, keepdims=True)
    return (x - mu) * lax.rsqrt(var + eps) * gamma + beta


def _encoder_layer_kernel(
    x_ref,        # (BT, S, H)      batch block of the encoder input
    mask_ref,     # (BT, S, S)      additive attention mask for this block
    ln_w_ref,     # (1, 4, H)       [attn_ln, mha_ln, ffn_ln, ff_ln] gammas (layer l)
    ln_b_ref,     # (1, 4, H)       betas
    w_qkvo_ref,   # (1, 4, H, H)    [Wq, Wk, Wv, Wo] stored (in, out)
    b_qkvo_ref,   # (1, 4, H)
    w1_ref,       # (1, H, I)
    b1_ref,       # (1, 1, I)
    w2_ref,       # (1, I, H)
    b2_ref,       # (1, 1, H)
    fin_ln_ref,   # (2, H)          final LayerNorm [gamma, beta]
    out_ref,      # collect_all: (BT, 1, S, H)   else: (BT, S, H)
    h_ref,        # VMEM scratch (BT*S, H) f32 -- hidden state carried across layer steps
    ctx_ref,      # VMEM scratch (BT*S, H) f32 -- per-head context assembly buffer
    *, b_tile, seq_len, n_heads, head_dim, eps, collect_all,
):
    l = pl.program_id(1)
    n_layers = pl.num_programs(1)
    S = seq_len
    H = n_heads * head_dim
    M = b_tile * S
    inv_sqrt_d = 1.0 / math.sqrt(head_dim)
    inv_sqrt2 = 1.0 / math.sqrt(2.0)

    # Initialize the carried hidden state from the input at the first layer.
    @pl.when(l == 0)
    def _():
        h_ref[...] = x_ref[...].reshape(M, H)

    h = h_ref[...]                     # (M, H)
    ln_w = ln_w_ref[0]                 # (4, H)
    ln_b = ln_b_ref[0]                 # (4, H)
    wqkvo = w_qkvo_ref[0]              # (4, H, H)
    bqkvo = b_qkvo_ref[0]              # (4, H)

    # ---- pre-attention LayerNorm ------------------------------------------
    x_n = _ln(h, ln_w[0:1], ln_b[0:1], eps)

    # ---- fat QKV projections over the whole batch block --------------------
    # (1/sqrt(head_dim) folded once into q)
    q = (jnp.dot(x_n, wqkvo[0], preferred_element_type=jnp.float32)
         + bqkvo[0:1]) * inv_sqrt_d
    k = jnp.dot(x_n, wqkvo[1], preferred_element_type=jnp.float32) + bqkvo[1:2]
    v = jnp.dot(x_n, wqkvo[2], preferred_element_type=jnp.float32) + bqkvo[2:3]

    # ---- attention core: per (batch, head) (S,S) matmuls -------------------
    # TODO(synk): attn/hidden dropout layers are identity (eval mode).
    for b in range(b_tile):                                  # static unroll
        rows = slice(b * S, (b + 1) * S)
        m_b = mask_ref[b]                                    # (S, S)
        for hd in range(n_heads):                            # static unroll
            cols = slice(hd * head_dim, (hd + 1) * head_dim)
            # contract on the last dims of both operands -> no k transpose
            scores = lax.dot_general(
                q[rows, cols], k[rows, cols],
                dimension_numbers=(((1,), (1,)), ((), ())),
                preferred_element_type=jnp.float32) + m_b
            mx = jnp.max(scores, axis=-1, keepdims=True)
            p = jnp.exp(scores - mx)
            denom = jnp.sum(p, axis=-1, keepdims=True)
            probs = p * pl.reciprocal(denom, approx=True)    # EUP, not VPU divide
            # write this head's context straight into its lane slice
            ctx_ref[rows, cols] = jnp.dot(probs, v[rows, cols],
                                          preferred_element_type=jnp.float32)

    # ---- single fat output projection --------------------------------------
    attn = jnp.dot(ctx_ref[...], wqkvo[3],
                   preferred_element_type=jnp.float32) + bqkvo[3:4]

    # MHA LayerNorm adds the *normed* input (the MHA module's input_tensor)
    mha_out = _ln(attn + x_n, ln_w[1:2], ln_b[1:2], eps)
    attn_output = mha_out + h                  # outer residual: raw input

    # ---- feed-forward -------------------------------------------------------
    y = _ln(attn_output, ln_w[2:3], ln_b[2:3], eps)
    h1 = jnp.dot(y, w1_ref[0], preferred_element_type=jnp.float32) + b1_ref[0]
    h1 = h1 * 0.5 * (1.0 + lax.erf(h1 * inv_sqrt2))          # exact GELU (matches reference)
    h2 = jnp.dot(h1, w2_ref[0], preferred_element_type=jnp.float32) + b2_ref[0]
    ff_out = _ln(h2 + y, ln_w[3:4], ln_b[3:4], eps)          # FF residual: normed y
    h_new = ff_out + attn_output                             # outer residual

    h_ref[...] = h_new                                       # carry to next layer step

    if collect_all:
        # per-layer output (no final LN), one contiguous slab per step
        out_ref[...] = h_new.reshape(b_tile, 1, S, H)
    else:
        # only the final LayerNorm output is ever written to HBM
        @pl.when(l == n_layers - 1)
        def _():
            fin = fin_ln_ref[...]
            out_ref[...] = _ln(h_new, fin[0:1], fin[1:2], eps).reshape(b_tile, S, H)


# ----------------------------------------------------------------------------
# Wrapper
# ----------------------------------------------------------------------------
def _pick_batch_tile(batch, max_tile=8):
    for t in range(min(batch, max_tile), 0, -1):
        if batch % t == 0:
            return t
    return 1


def transformer_encoder_forward(x, attention_mask, packed_params, *,
                                n_layers, n_heads, eps,
                                output_all_encoded_layers=True):
    B, S, H = x.shape
    head_dim = H // n_heads

    # Accept the reference's (B,1,S,S) broadcast additive mask (or (B,S,S)).
    if attention_mask.ndim == 4:
        assert attention_mask.shape == (B, 1, S, S), attention_mask.shape
        mask = attention_mask.reshape(B, S, S)
    else:
        assert attention_mask.shape == (B, S, S), attention_mask.shape
        mask = attention_mask
    mask = mask.astype(jnp.float32)

    (ln_w, ln_b, w_qkvo, b_qkvo, w1, b1, w2, b2, fin_ln) = packed_params
    I = w1.shape[-1]

    BT = _pick_batch_tile(B)
    grid = (B // BT, n_layers)

    kernel = partial(_encoder_layer_kernel, b_tile=BT, seq_len=S,
                     n_heads=n_heads, head_dim=head_dim, eps=eps,
                     collect_all=output_all_encoded_layers)

    in_specs = [
        pl.BlockSpec((BT, S, H), lambda i, l: (i, 0, 0)),        # x (constant over l)
        pl.BlockSpec((BT, S, S), lambda i, l: (i, 0, 0)),        # mask (constant over l)
        pl.BlockSpec((1, 4, H), lambda i, l: (l, 0, 0)),         # ln_w, streamed per layer
        pl.BlockSpec((1, 4, H), lambda i, l: (l, 0, 0)),         # ln_b
        pl.BlockSpec((1, 4, H, H), lambda i, l: (l, 0, 0, 0)),   # w_qkvo
        pl.BlockSpec((1, 4, H), lambda i, l: (l, 0, 0)),         # b_qkvo
        pl.BlockSpec((1, H, I), lambda i, l: (l, 0, 0)),         # w1
        pl.BlockSpec((1, 1, I), lambda i, l: (l, 0, 0)),         # b1
        pl.BlockSpec((1, I, H), lambda i, l: (l, 0, 0)),         # w2
        pl.BlockSpec((1, 1, H), lambda i, l: (l, 0, 0)),         # b2
        pl.BlockSpec((2, H), lambda i, l: (0, 0)),               # final LN (tiny, constant)
    ]

    if output_all_encoded_layers:
        out_shape = jax.ShapeDtypeStruct((B, n_layers, S, H), jnp.float32)
        out_specs = pl.BlockSpec((BT, 1, S, H), lambda i, l: (i, l, 0, 0))
    else:
        out_shape = jax.ShapeDtypeStruct((B, S, H), jnp.float32)
        out_specs = pl.BlockSpec((BT, S, H), lambda i, l: (i, 0, 0))

    out = pl.pallas_call(
        kernel,
        out_shape=out_shape,
        grid=grid,
        in_specs=in_specs,
        out_specs=out_specs,
        scratch_shapes=[
            pltpu.VMEM((BT * S, H), jnp.float32),   # carried hidden state
            pltpu.VMEM((BT * S, H), jnp.float32),   # per-head context buffer
        ],
        compiler_params=pltpu.CompilerParams(
            dimension_semantics=("parallel", "arbitrary")),
    )(x.astype(jnp.float32), mask, ln_w, ln_b, w_qkvo, b_qkvo,
      w1, b1, w2, b2, fin_ln)

    if output_all_encoded_layers:
        return [out[:, l] for l in range(n_layers)]
    return [out]


# ----------------------------------------------------------------------------
# Deterministic parameter construction (mirrors the PyTorch __init__)
# ----------------------------------------------------------------------------
def _xavier_uniform(key, fan_in, fan_out):
    # Stored as (in, out) so the kernel computes x @ W (== torch x @ W.T).
    bound = math.sqrt(6.0 / (fan_in + fan_out))
    return jax.random.uniform(key, (fan_in, fan_out), jnp.float32, -bound, bound)


def init_encoder_params(key, n_layers, hidden_size, inner_size):
    H, I = hidden_size, inner_size
    ks = jax.random.split(key, 12)

    def bias(k, n):
        return jax.random.normal(k, (n,), jnp.float32) * 1e-6

    w_qkvo = jnp.stack([_xavier_uniform(ks[0], H, H),   # query
                        _xavier_uniform(ks[2], H, H),   # key
                        _xavier_uniform(ks[4], H, H),   # value
                        _xavier_uniform(ks[6], H, H)])  # dense (attn out proj)
    b_qkvo = jnp.stack([bias(ks[1], H), bias(ks[3], H),
                        bias(ks[5], H), bias(ks[7], H)])
    w1 = _xavier_uniform(ks[8], H, I)
    b1 = bias(ks[9], I).reshape(1, I)
    w2 = _xavier_uniform(ks[10], I, H)
    b2 = bias(ks[11], H).reshape(1, H)
    ln_w = jnp.ones((4, H), jnp.float32)    # attn_ln, mha_ln, ffn_ln, ff_ln
    ln_b = jnp.zeros((4, H), jnp.float32)

    # PyTorch builds one layer and deepcopies it -> identical initial weights.
    def stack_layers(a):
        return jnp.stack([a] * n_layers)

    fin_ln = jnp.stack([jnp.ones((H,), jnp.float32),
                        jnp.zeros((H,), jnp.float32)])   # (2, H)

    return [stack_layers(ln_w), stack_layers(ln_b),
            stack_layers(w_qkvo), stack_layers(b_qkvo),
            stack_layers(w1), stack_layers(b1),
            stack_layers(w2), stack_layers(b2),
            fin_ln]


# ----------------------------------------------------------------------------
# Pure-JAX reference (mirrors the PyTorch forward exactly) for verification
# ----------------------------------------------------------------------------
def _ref_forward(x, mask4, params, *, n_layers, n_heads, eps, output_all):
    ln_w, ln_b, w_qkvo, b_qkvo, w1, b1, w2, b2, fin_ln = params
    B, S, H = x.shape
    d = H // n_heads
    mask = mask4.reshape(B, 1, S, S).astype(jnp.float32)
    h = x
    outs = []
    for l in range(n_layers):
        xn = _ln(h, ln_w[l, 0], ln_b[l, 0], eps)
        q = xn @ w_qkvo[l, 0] + b_qkvo[l, 0]
        k = xn @ w_qkvo[l, 1] + b_qkvo[l, 1]
        v = xn @ w_qkvo[l, 2] + b_qkvo[l, 2]

        def split(t):
            return t.reshape(B, S, n_heads, d).transpose(0, 2, 1, 3)

        qh, kh, vh = split(q), split(k), split(v)
        scores = (qh @ kh.transpose(0, 1, 3, 2)) / math.sqrt(d) + mask
        probs = jax.nn.softmax(scores, axis=-1)
        ctx = (probs @ vh).transpose(0, 2, 1, 3).reshape(B, S, H)
        attn = ctx @ w_qkvo[l, 3] + b_qkvo[l, 3]
        mha = _ln(attn + xn, ln_w[l, 1], ln_b[l, 1], eps)
        attn_out = mha + h
        y = _ln(attn_out, ln_w[l, 2], ln_b[l, 2], eps)
        h1 = y @ w1[l] + b1[l]
        h1 = h1 * 0.5 * (1.0 + lax.erf(h1 / math.sqrt(2.0)))
        h2 = h1 @ w2[l] + b2[l]
        ff = _ln(h2 + y, ln_w[l, 3], ln_b[l, 3], eps)
        h = ff + attn_out
        outs.append(h)
    final = _ln(h, fin_ln[0], fin_ln[1], eps)
    if output_all:
        return outs
    return [final]


# ----------------------------------------------------------------------------
if __name__ == "__main__":
    # Config matches TransformerEncoder defaults (small seq/batch).
    n_layers, n_heads = 2, 2
    hidden_size, inner_size = 64, 256
    layer_norm_eps = 1e-12
    B, S = 2, 8

    key = jax.random.PRNGKey(0)
    k_x, k_p = jax.random.split(key)

    x = jax.random.normal(k_x, (B, S, hidden_size), jnp.float32)
    # additive attention mask (0 for valid, -1e4 for masked): mask last 2 keys
    valid = (jnp.arange(S) < S - 2).astype(jnp.float32)           # (S,)
    mask = (1.0 - valid)[None, None, None, :] * -1e4              # (1,1,1,S)
    mask = jnp.broadcast_to(mask, (B, 1, S, S)).astype(jnp.float32)

    packed = init_encoder_params(k_p, n_layers, hidden_size, inner_size)

    outs_all = transformer_encoder_forward(
        x, mask, packed, n_layers=n_layers, n_heads=n_heads,
        eps=layer_norm_eps, output_all_encoded_layers=True)
    outs_final = transformer_encoder_forward(
        x, mask, packed, n_layers=n_layers, n_heads=n_heads,
        eps=layer_norm_eps, output_all_encoded_layers=False)

    for o in outs_all + outs_final:
        jax.block_until_ready(o)

    ref_all = _ref_forward(x, mask, packed, n_layers=n_layers, n_heads=n_heads,
                           eps=layer_norm_eps, output_all=True)
    ref_final = _ref_forward(x, mask, packed, n_layers=n_layers, n_heads=n_heads,
                             eps=layer_norm_eps, output_all=False)

    assert len(outs_all) == n_layers
    assert outs_all[-1].shape == (B, S, hidden_size)
    assert len(outs_final) == 1 and outs_final[0].shape == (B, S, hidden_size)

    max_err = 0.0
    for o, r in zip(outs_all + outs_final, ref_all + ref_final):
        assert bool(jnp.isfinite(o).all())
        max_err = max(max_err, float(jnp.max(jnp.abs(o - r))))
    # loose tolerance: approx-reciprocal softmax is a (review-requested) deviation
    assert max_err < 5e-2, f"max |err| vs reference = {max_err}"
    print("KERNEL_OK")
</pallas_src>

<mosaic_0001>
module attributes {stable_mosaic.version = 11 : i64} {
  func.func @_encoder_layer_kernel(%arg0: i32, %arg1: i32, %arg2: memref<2x8x64xf32, #tpu.memory_space<vmem>>, %arg3: memref<2x8x8xf32, #tpu.memory_space<vmem>>, %arg4: memref<1x4x64xf32, #tpu.memory_space<vmem>>, %arg5: memref<1x4x64xf32, #tpu.memory_space<vmem>>, %arg6: memref<1x4x64x64xf32, #tpu.memory_space<vmem>>, %arg7: memref<1x4x64xf32, #tpu.memory_space<vmem>>, %arg8: memref<1x64x256xf32, #tpu.memory_space<vmem>>, %arg9: memref<1x1x256xf32, #tpu.memory_space<vmem>>, %arg10: memref<1x256x64xf32, #tpu.memory_space<vmem>>, %arg11: memref<1x1x64xf32, #tpu.memory_space<vmem>>, %arg12: memref<2x64xf32, #tpu.memory_space<vmem>>, %arg13: memref<2x1x8x64xf32, #tpu.memory_space<vmem>>, %arg14: memref<16x64xf32, #tpu.memory_space<vmem>>, %arg15: memref<16x64xf32, #tpu.memory_space<vmem>>) attributes {dimension_semantics = [#tpu.dimension_semantics<parallel>, #tpu.dimension_semantics<arbitrary>], iteration_bounds = array<i64: 1, 2>, scalar_prefetch = 0 : i64, scratch_operands = 2 : i64, tpu.core_type = #tpu.core_type<tc>, window_params = [{transform_indices = @transform_0, window_bounds = array<i64: 2, 8, 64>}, {transform_indices = @transform_1, window_bounds = array<i64: 2, 8, 8>}, {transform_indices = @transform_2, window_bounds = array<i64: 1, 4, 64>}, {transform_indices = @transform_3, window_bounds = array<i64: 1, 4, 64>}, {transform_indices = @transform_4, window_bounds = array<i64: 1, 4, 64, 64>}, {transform_indices = @transform_5, window_bounds = array<i64: 1, 4, 64>}, {transform_indices = @transform_6, window_bounds = array<i64: 1, 64, 256>}, {transform_indices = @transform_7, window_bounds = array<i64: 1, 1, 256>}, {transform_indices = @transform_8, window_bounds = array<i64: 1, 256, 64>}, {transform_indices = @transform_9, window_bounds = array<i64: 1, 1, 64>}, {pipeline_mode = #tpu.pipeline_mode<synchronous>, transform_indices = @transform_10, window_bounds = array<i64: 2, 64>}, {transform_indices = @transform_11, window_bounds = array<i64: 2, 1, 8, 64>}]} {
    %c0_i32 = arith.constant 0 : i32
    %0 = arith.cmpi eq, %arg1, %c0_i32 : i32
    %1 = arith.extui %0 : i1 to i32
    %c0_i32_0 = arith.constant 0 : i32
    %2 = arith.cmpi ne, %1, %c0_i32_0 : i32
    scf.if %2 {
      %c0_91 = arith.constant 0 : index
      %c0_92 = arith.constant 0 : index
      %c0_93 = arith.constant 0 : index
      %236 = vector.load %arg2[%c0_91, %c0_92, %c0_93] : memref<2x8x64xf32, #tpu.memory_space<vmem>>, vector<2x8x64xf32>
      %237 = vector.shape_cast %236 : vector<2x8x64xf32> to vector<16x64xf32>
      %c0_94 = arith.constant 0 : index
      %c0_95 = arith.constant 0 : index
      %238 = vector.load %arg14[%c0_94, %c0_95] : memref<16x64xf32, #tpu.memory_space<vmem>>, vector<16x64xf32>
      tpu.vector_store %arg14[%c0_94, %c0_95], %237 {strides = array<i32>} : memref<16x64xf32, #tpu.memory_space<vmem>>, vector<16x64xf32>,
    } else {
    }
    %c0 = arith.constant 0 : index
    %c0_1 = arith.constant 0 : index
    %3 = vector.load %arg14[%c0, %c0_1] : memref<16x64xf32, #tpu.memory_space<vmem>>, vector<16x64xf32>
    %c0_2 = arith.constant 0 : index
    %c0_3 = arith.constant 0 : index
    %c0_4 = arith.constant 0 : index
    %4 = vector.load %arg4[%c0_2, %c0_3, %c0_4] : memref<1x4x64xf32, #tpu.memory_space<vmem>>, vector<1x4x64xf32>
    %5 = vector.shape_cast %4 : vector<1x4x64xf32> to vector<4x64xf32>
    %c0_5 = arith.constant 0 : index
    %c0_6 = arith.constant 0 : index
    %c0_7 = arith.constant 0 : index
    %6 = vector.load %arg5[%c0_5, %c0_6, %c0_7] : memref<1x4x64xf32, #tpu.memory_space<vmem>>, vector<1x4x64xf32>
    %7 = vector.shape_cast %6 : vector<1x4x64xf32> to vector<4x64xf32>
    %c0_8 = arith.constant 0 : index
    %c0_9 = arith.constant 0 : index
    %c0_10 = arith.constant 0 : index
    %c0_11 = arith.constant 0 : index
    %8 = vector.load %arg6[%c0_8, %c0_9, %c0_10, %c0_11] : memref<1x4x64x64xf32, #tpu.memory_space<vmem>>, vector<1x4x64x64xf32>
    %9 = vector.shape_cast %8 : vector<1x4x64x64xf32> to vector<4x64x64xf32>
    %c0_12 = arith.constant 0 : index
    %c0_13 = arith.constant 0 : index
    %c0_14 = arith.constant 0 : index
    %10 = vector.load %arg7[%c0_12, %c0_13, %c0_14] : memref<1x4x64xf32, #tpu.memory_space<vmem>>, vector<1x4x64xf32>
    %11 = vector.shape_cast %10 : vector<1x4x64xf32> to vector<4x64xf32>
    %12 = vector.extract_strided_slice %5 {offsets = [0, 0], sizes = [1, 64], strides = [1, 1]} : vector<4x64xf32> to vector<1x64xf32>
    %13 = vector.extract_strided_slice %7 {offsets = [0, 0], sizes = [1, 64], strides = [1, 1]} : vector<4x64xf32> to vector<1x64xf32>
    %cst = arith.constant dense<0.000000e+00> : vector<16xf32>
    %14 = vector.multi_reduction <add>, %3, %cst [1] : vector<16x64xf32> to vector<16xf32>
    %15 = vector.shape_cast %14 : vector<16xf32> to vector<16x1xf32>
    %cst_15 = arith.constant 6.400000e+01 : f32
    %16 = vector.broadcast %cst_15 : f32 to vector<16x1xf32>
    %17 = arith.divf %15, %16 : vector<16x1xf32>
    %18 = vector.broadcast %17 : vector<16x1xf32> to vector<16x64xf32>
    %19 = arith.subf %3, %18 : vector<16x64xf32>
    %20 = arith.mulf %19, %19 : vector<16x64xf32>
    %cst_16 = arith.constant dense<0.000000e+00> : vector<16xf32>
    %21 = vector.multi_reduction <add>, %20, %cst_16 [1] : vector<16x64xf32> to vector<16xf32>
    %22 = vector.shape_cast %21 : vector<16xf32> to vector<16x1xf32>
    %cst_17 = arith.constant 6.400000e+01 : f32
    %23 = vector.broadcast %cst_17 : f32 to vector<16x1xf32>
    %24 = arith.divf %22, %23 : vector<16x1xf32>
    %25 = vector.broadcast %17 : vector<16x1xf32> to vector<16x64xf32>
    %26 = arith.subf %3, %25 : vector<16x64xf32>
    %cst_18 = arith.constant 9.99999996E-13 : f32
    %27 = vector.broadcast %cst_18 : f32 to vector<16x1xf32>
    %28 = arith.addf %24, %27 : vector<16x1xf32>
    %29 = math.rsqrt %28 : vector<16x1xf32>
    %30 = vector.broadcast %29 : vector<16x1xf32> to vector<16x64xf32>
    %31 = arith.mulf %26, %30 : vector<16x64xf32>
    %32 = vector.broadcast %12 : vector<1x64xf32> to vector<16x64xf32>
    %33 = arith.mulf %31, %32 : vector<16x64xf32>
    %34 = vector.broadcast %13 : vector<1x64xf32> to vector<16x64xf32>
    %35 = arith.addf %33, %34 : vector<16x64xf32>
    %36 = vector.extract_strided_slice %9 {offsets = [0, 0, 0], sizes = [1, 64, 64], strides = [1, 1, 1]} : vector<4x64x64xf32> to vector<1x64x64xf32>
    %37 = vector.shape_cast %36 : vector<1x64x64xf32> to vector<64x64xf32>
    %cst_19 = arith.constant dense<0.000000e+00> : vector<16x64xf32>
    %38 = tpu.matmul %35, %37, %cst_19 {dimension_numbers = #tpu.dot_dimension_numbers<[1], [0], [0], [1], [0, 0, 1, 1], [], []>} : vector<16x64xf32>, vector<64x64xf32>, vector<16x64xf32> -> vector<16x64xf32>
    %39 = vector.extract_strided_slice %11 {offsets = [0, 0], sizes = [1, 64], strides = [1, 1]} : vector<4x64xf32> to vector<1x64xf32>
    %40 = vector.broadcast %39 : vector<1x64xf32> to vector<16x64xf32>
    %41 = arith.addf %38, %40 : vector<16x64xf32>
    %cst_20 = arith.constant 0.176776692 : f32
    %42 = vector.broadcast %cst_20 : f32 to vector<16x64xf32>
    %43 = arith.mulf %41, %42 : vector<16x64xf32>
    %44 = vector.extract_strided_slice %9 {offsets = [1, 0, 0], sizes = [1, 64, 64], strides = [1, 1, 1]} : vector<4x64x64xf32> to vector<1x64x64xf32>
    %45 = vector.shape_cast %44 : vector<1x64x64xf32> to vector<64x64xf32>
    %cst_21 = arith.constant dense<0.000000e+00> : vector<16x64xf32>
    %46 = tpu.matmul %35, %45, %cst_21 {dimension_numbers = #tpu.dot_dimension_numbers<[1], [0], [0], [1], [0, 0, 1, 1], [], []>} : vector<16x64xf32>, vector<64x64xf32>, vector<16x64xf32> -> vector<16x64xf32>
    %47 = vector.extract_strided_slice %11 {offsets = [1, 0], sizes = [1, 64], strides = [1, 1]} : vector<4x64xf32> to vector<1x64xf32>
    %48 = vector.broadcast %47 : vector<1x64xf32> to vector<16x64xf32>
    %49 = arith.addf %46, %48 : vector<16x64xf32>
    %50 = vector.extract_strided_slice %9 {offsets = [2, 0, 0], sizes = [1, 64, 64], strides = [1, 1, 1]} : vector<4x64x64xf32> to vector<1x64x64xf32>
    %51 = vector.shape_cast %50 : vector<1x64x64xf32> to vector<64x64xf32>
    %cst_22 = arith.constant dense<0.000000e+00> : vector<16x64xf32>
    %52 = tpu.matmul %35, %51, %cst_22 {dimension_numbers = #tpu.dot_dimension_numbers<[1], [0], [0], [1], [0, 0, 1, 1], [], []>} : vector<16x64xf32>, vector<64x64xf32>, vector<16x64xf32> -> vector<16x64xf32>
    %53 = vector.extract_strided_slice %11 {offsets = [2, 0], sizes = [1, 64], strides = [1, 1]} : vector<4x64xf32> to vector<1x64xf32>
    %54 = vector.broadcast %53 : vector<1x64xf32> to vector<16x64xf32>
    %55 = arith.addf %52, %54 : vector<16x64xf32>
    %c0_23 = arith.constant 0 : index
    %c0_24 = arith.constant 0 : index
    %c0_25 = arith.constant 0 : index
    %56 = vector.load %arg3[%c0_23, %c0_24, %c0_25] : memref<2x8x8xf32, #tpu.memory_space<vmem>>, vector<1x8x8xf32>
    %57 = vector.shape_cast %56 : vector<1x8x8xf32> to vector<8x8xf32>
    %58 = vector.extract_strided_slice %43 {offsets = [0, 0], sizes = [8, 32], strides = [1, 1]} : vector<16x64xf32> to vector<8x32xf32>
    %59 = vector.extract_strided_slice %49 {offsets = [0, 0], sizes = [8, 32], strides = [1, 1]} : vector<16x64xf32> to vector<8x32xf32>
    %cst_26 = arith.constant dense<0.000000e+00> : vector<8x8xf32>
    %60 = tpu.matmul %58, %59, %cst_26 {dimension_numbers = #tpu.dot_dimension_numbers<[1], [1], [0], [0], [0, 0, 1, 0], [], []>} : vector<8x32xf32>, vector<8x32xf32>, vector<8x8xf32> -> vector<8x8xf32>
    %61 = arith.addf %60, %57 : vector<8x8xf32>
    %cst_27 = arith.constant dense<0xFF800000> : vector<8xf32>
    %62 = vector.multi_reduction <maximumf>, %61, %cst_27 [1] : vector<8x8xf32> to vector<8xf32>
    %63 = vector.shape_cast %62 : vector<8xf32> to vector<8x1xf32>
    %64 = vector.broadcast %63 : vector<8x1xf32> to vector<8x8xf32>
    %65 = arith.subf %61, %64 : vector<8x8xf32>
    %66 = math.exp %65 : vector<8x8xf32>
    %cst_28 = arith.constant dense<0.000000e+00> : vector<8xf32>
    %67 = vector.multi_reduction <add>, %66, %cst_28 [1] : vector<8x8xf32> to vector<8xf32>
    %68 = vector.shape_cast %67 : vector<8xf32> to vector<8x1xf32>
    %69 = tpu.reciprocal %68 {approx = true} : vector<8x1xf32> -> vector<8x1xf32>
    %70 = vector.broadcast %69 : vector<8x1xf32> to vector<8x8xf32>
    %71 = arith.mulf %66, %70 : vector<8x8xf32>
    %72 = vector.extract_strided_slice %55 {offsets = [0, 0], sizes = [8, 32], strides = [1, 1]} : vector<16x64xf32> to vector<8x32xf32>
    %cst_29 = arith.constant dense<0.000000e+00> : vector<8x32xf32>
    %73 = tpu.matmul %71, %72, %cst_29 {dimension_numbers = #tpu.dot_dimension_numbers<[1], [0], [0], [1], [0, 0, 1, 1], [], []>} : vector<8x8xf32>, vector<8x32xf32>, vector<8x32xf32> -> vector<8x32xf32>
    %c0_30 = arith.constant 0 : index
    %c0_31 = arith.constant 0 : index
    %74 = vector.load %arg15[%c0_30, %c0_31] : memref<16x64xf32, #tpu.memory_space<vmem>>, vector<8x32xf32>
    tpu.vector_store %arg15[%c0_30, %c0_31], %73 {strides = array<i32>} : memref<16x64xf32, #tpu.memory_space<vmem>>, vector<8x32xf32>,
    %75 = vector.extract_strided_slice %43 {offsets = [0, 32], sizes = [8, 32], strides = [1, 1]} : vector<16x64xf32> to vector<8x32xf32>
    %76 = vector.extract_strided_slice %49 {offsets = [0, 32], sizes = [8, 32], strides = [1, 1]} : vector<16x64xf32> to vector<8x32xf32>
    %cst_32 = arith.constant dense<0.000000e+00> : vector<8x8xf32>
    %77 = tpu.matmul %75, %76, %cst_32 {dimension_numbers = #tpu.dot_dimension_numbers<[1], [1], [0], [0], [0, 0, 1, 0], [], []>} : vector<8x32xf32>, vector<8x32xf32>, vector<8x8xf32> -> vector<8x8xf32>
    %78 = arith.addf %77, %57 : vector<8x8xf32>
    %cst_33 = arith.constant dense<0xFF800000> : vector<8xf32>
    %79 = vector.multi_reduction <maximumf>, %78, %cst_33 [1] : vector<8x8xf32> to vector<8xf32>
    %80 = vector.shape_cast %79 : vector<8xf32> to vector<8x1xf32>
    %81 = vector.broadcast %80 : vector<8x1xf32> to vector<8x8xf32>
    %82 = arith.subf %78, %81 : vector<8x8xf32>
    %83 = math.exp %82 : vector<8x8xf32>
    %cst_34 = arith.constant dense<0.000000e+00> : vector<8xf32>
    %84 = vector.multi_reduction <add>, %83, %cst_34 [1] : vector<8x8xf32> to vector<8xf32>
    %85 = vector.shape_cast %84 : vector<8xf32> to vector<8x1xf32>
    %86 = tpu.reciprocal %85 {approx = true} : vector<8x1xf32> -> vector<8x1xf32>
    %87 = vector.broadcast %86 : vector<8x1xf32> to vector<8x8xf32>
    %88 = arith.mulf %83, %87 : vector<8x8xf32>
    %89 = vector.extract_strided_slice %55 {offsets = [0, 32], sizes = [8, 32], strides = [1, 1]} : vector<16x64xf32> to vector<8x32xf32>
    %cst_35 = arith.constant dense<0.000000e+00> : vector<8x32xf32>
    %90 = tpu.matmul %88, %89, %cst_35 {dimension_numbers = #tpu.dot_dimension_numbers<[1], [0], [0], [1], [0, 0, 1, 1], [], []>} : vector<8x8xf32>, vector<8x32xf32>, vector<8x32xf32> -> vector<8x32xf32>
    %c0_36 = arith.constant 0 : index
    %c32 = arith.constant 32 : index
    %91 = vector.load %arg15[%c0_36, %c32] : memref<16x64xf32, #tpu.memory_space<vmem>>, vector<8x32xf32>
    tpu.vector_store %arg15[%c0_36, %c32], %90 {strides = array<i32>} : memref<16x64xf32, #tpu.memory_space<vmem>>, vector<8x32xf32>,
    %c1 = arith.constant 1 : index
    %c0_37 = arith.constant 0 : index
    %c0_38 = arith.constant 0 : index
    %92 = vector.load %arg3[%c1, %c0_37, %c0_38] : memref<2x8x8xf32, #tpu.memory_space<vmem>>, vector<1x8x8xf32>
    %93 = vector.shape_cast %92 : vector<1x8x8xf32> to vector<8x8xf32>
    %94 = vector.extract_strided_slice %43 {offsets = [8, 0], sizes = [8, 32], strides = [1, 1]} : vector<16x64xf32> to vector<8x32xf32>
    %95 = vector.extract_strided_slice %49 {offsets = [8, 0], sizes = [8, 32], strides = [1, 1]} : vector<16x64xf32> to vector<8x32xf32>
    %cst_39 = arith.constant dense<0.000000e+00> : vector<8x8xf32>
    %96 = tpu.matmul %94, %95, %cst_39 {dimension_numbers = #tpu.dot_dimension_numbers<[1], [1], [0], [0], [0, 0, 1, 0], [], []>} : vector<8x32xf32>, vector<8x32xf32>, vector<8x8xf32> -> vector<8x8xf32>
    %97 = arith.addf %96, %93 : vector<8x8xf32>
    %cst_40 = arith.constant dense<0xFF800000> : vector<8xf32>
    %98 = vector.multi_reduction <maximumf>, %97, %cst_40 [1] : vector<8x8xf32> to vector<8xf32>
    %99 = vector.shape_cast %98 : vector<8xf32> to vector<8x1xf32>
    %100 = vector.broadcast %99 : vector<8x1xf32> to vector<8x8xf32>
    %101 = arith.subf %97, %100 : vector<8x8xf32>
    %102 = math.exp %101 : vector<8x8xf32>
    %cst_41 = arith.constant dense<0.000000e+00> : vector<8xf32>
    %103 = vector.multi_reduction <add>, %102, %cst_41 [1] : vector<8x8xf32> to vector<8xf32>
    %104 = vector.shape_cast %103 : vector<8xf32> to vector<8x1xf32>
    %105 = tpu.reciprocal %104 {approx = true} : vector<8x1xf32> -> vector<8x1xf32>
    %106 = vector.broadcast %105 : vector<8x1xf32> to vector<8x8xf32>
    %107 = arith.mulf %102, %106 : vector<8x8xf32>
    %108 = vector.extract_strided_slice %55 {offsets = [8, 0], sizes = [8, 32], strides = [1, 1]} : vector<16x64xf32> to vector<8x32xf32>
    %cst_42 = arith.constant dense<0.000000e+00> : vector<8x32xf32>
    %109 = tpu.matmul %107, %108, %cst_42 {dimension_numbers = #tpu.dot_dimension_numbers<[1], [0], [0], [1], [0, 0, 1, 1], [], []>} : vector<8x8xf32>, vector<8x32xf32>, vector<8x32xf32> -> vector<8x32xf32>
    %c8 = arith.constant 8 : index
    %c0_43 = arith.constant 0 : index
    %110 = vector.load %arg15[%c8, %c0_43] : memref<16x64xf32, #tpu.memory_space<vmem>>, vector<8x32xf32>
    tpu.vector_store %arg15[%c8, %c0_43], %109 {strides = array<i32>} : memref<16x64xf32, #tpu.memory_space<vmem>>, vector<8x32xf32>,
    %111 = vector.extract_strided_slice %43 {offsets = [8, 32], sizes = [8, 32], strides = [1, 1]} : vector<16x64xf32> to vector<8x32xf32>
    %112 = vector.extract_strided_slice %49 {offsets = [8, 32], sizes = [8, 32], strides = [1, 1]} : vector<16x64xf32> to vector<8x32xf32>
    %cst_44 = arith.constant dense<0.000000e+00> : vector<8x8xf32>
    %113 = tpu.matmul %111, %112, %cst_44 {dimension_numbers = #tpu.dot_dimension_numbers<[1], [1], [0], [0], [0, 0, 1, 0], [], []>} : vector<8x32xf32>, vector<8x32xf32>, vector<8x8xf32> -> vector<8x8xf32>
    %114 = arith.addf %113, %93 : vector<8x8xf32>
    %cst_45 = arith.constant dense<0xFF800000> : vector<8xf32>
    %115 = vector.multi_reduction <maximumf>, %114, %cst_45 [1] : vector<8x8xf32> to vector<8xf32>
    %116 = vector.shape_cast %115 : vector<8xf32> to vector<8x1xf32>
    %117 = vector.broadcast %116 : vector<8x1xf32> to vector<8x8xf32>
    %118 = arith.subf %114, %117 : vector<8x8xf32>
    %119 = math.exp %118 : vector<8x8xf32>
    %cst_46 = arith.constant dense<0.000000e+00> : vector<8xf32>
    %120 = vector.multi_reduction <add>, %119, %cst_46 [1] : vector<8x8xf32> to vector<8xf32>
    %121 = vector.shape_cast %120 : vector<8xf32> to vector<8x1xf32>
    %122 = tpu.reciprocal %121 {approx = true} : vector<8x1xf32> -> vector<8x1xf32>
    %123 = vector.broadcast %122 : vector<8x1xf32> to vector<8x8xf32>
    %124 = arith.mulf %119, %123 : vector<8x8xf32>
    %125 = vector.extract_strided_slice %55 {offsets = [8, 32], sizes = [8, 32], strides = [1, 1]} : vector<16x64xf32> to vector<8x32xf32>
    %cst_47 = arith.constant dense<0.000000e+00> : vector<8x32xf32>
    %126 = tpu.matmul %124, %125, %cst_47 {dimension_numbers = #tpu.dot_dimension_numbers<[1], [0], [0], [1], [0, 0, 1, 1], [], []>} : vector<8x8xf32>, vector<8x32xf32>, vector<8x32xf32> -> vector<8x32xf32>
    %c8_48 = arith.constant 8 : index
    %c32_49 = arith.constant 32 : index
    %127 = vector.load %arg15[%c8_48, %c32_49] : memref<16x64xf32, #tpu.memory_space<vmem>>, vector<8x32xf32>
    tpu.vector_store %arg15[%c8_48, %c32_49], %126 {strides = array<i32>} : memref<16x64xf32, #tpu.memory_space<vmem>>, vector<8x32xf32>,
    %c0_50 = arith.constant 0 : index
    %c0_51 = arith.constant 0 : index
    %128 = vector.load %arg15[%c0_50, %c0_51] : memref<16x64xf32, #tpu.memory_space<vmem>>, vector<16x64xf32>
    %129 = vector.extract_strided_slice %9 {offsets = [3, 0, 0], sizes = [1, 64, 64], strides = [1, 1, 1]} : vector<4x64x64xf32> to vector<1x64x64xf32>
    %130 = vector.shape_cast %129 : vector<1x64x64xf32> to vector<64x64xf32>
    %cst_52 = arith.constant dense<0.000000e+00> : vector<16x64xf32>
    %131 = tpu.matmul %128, %130, %cst_52 {dimension_numbers = #tpu.dot_dimension_numbers<[1], [0], [0], [1], [0, 0, 1, 1], [], []>} : vector<16x64xf32>, vector<64x64xf32>, vector<16x64xf32> -> vector<16x64xf32>
    %132 = vector.extract_strided_slice %11 {offsets = [3, 0], sizes = [1, 64], strides = [1, 1]} : vector<4x64xf32> to vector<1x64xf32>
    %133 = vector.broadcast %132 : vector<1x64xf32> to vector<16x64xf32>
    %134 = arith.addf %131, %133 : vector<16x64xf32>
    %135 = arith.addf %134, %35 : vector<16x64xf32>
    %136 = vector.extract_strided_slice %5 {offsets = [1, 0], sizes = [1, 64], strides = [1, 1]} : vector<4x64xf32> to vector<1x64xf32>
    %137 = vector.extract_strided_slice %7 {offsets = [1, 0], sizes = [1, 64], strides = [1, 1]} : vector<4x64xf32> to vector<1x64xf32>
    %cst_53 = arith.constant dense<0.000000e+00> : vector<16xf32>
    %138 = vector.multi_reduction <add>, %135, %cst_53 [1] : vector<16x64xf32> to vector<16xf32>
    %139 = vector.shape_cast %138 : vector<16xf32> to vector<16x1xf32>
    %cst_54 = arith.constant 6.400000e+01 : f32
    %140 = vector.broadcast %cst_54 : f32 to vector<16x1xf32>
    %141 = arith.divf %139, %140 : vector<16x1xf32>
    %142 = vector.broadcast %141 : vector<16x1xf32> to vector<16x64xf32>
    %143 = arith.subf %135, %142 : vector<16x64xf32>
    %144 = arith.mulf %143, %143 : vector<16x64xf32>
    %cst_55 = arith.constant dense<0.000000e+00> : vector<16xf32>
    %145 = vector.multi_reduction <add>, %144, %cst_55 [1] : vector<16x64xf32> to vector<16xf32>
    %146 = vector.shape_cast %145 : vector<16xf32> to vector<16x1xf32>
    %cst_56 = arith.constant 6.400000e+01 : f32
    %147 = vector.broadcast %cst_56 : f32 to vector<16x1xf32>
    %148 = arith.divf %146, %147 : vector<16x1xf32>
    %149 = vector.broadcast %141 : vector<16x1xf32> to vector<16x64xf32>
    %150 = arith.subf %135, %149 : vector<16x64xf32>
    %cst_57 = arith.constant 9.99999996E-13 : f32
    %151 = vector.broadcast %cst_57 : f32 to vector<16x1xf32>
    %152 = arith.addf %148, %151 : vector<16x1xf32>
    %153 = math.rsqrt %152 : vector<16x1xf32>
    %154 = vector.broadcast %153 : vector<16x1xf32> to vector<16x64xf32>
    %155 = arith.mulf %150, %154 : vector<16x64xf32>
    %156 = vector.broadcast %136 : vector<1x64xf32> to vector<16x64xf32>
    %157 = arith.mulf %155, %156 : vector<16x64xf32>
    %158 = vector.broadcast %137 : vector<1x64xf32> to vector<16x64xf32>
    %159 = arith.addf %157, %158 : vector<16x64xf32>
    %160 = arith.addf %159, %3 : vector<16x64xf32>
    %161 = vector.extract_strided_slice %5 {offsets = [2, 0], sizes = [1, 64], strides = [1, 1]} : vector<4x64xf32> to vector<1x64xf32>
    %162 = vector.extract_strided_slice %7 {offsets = [2, 0], sizes = [1, 64], strides = [1, 1]} : vector<4x64xf32> to vector<1x64xf32>
    %cst_58 = arith.constant dense<0.000000e+00> : vector<16xf32>
    %163 = vector.multi_reduction <add>, %160, %cst_58 [1] : vector<16x64xf32> to vector<16xf32>
    %164 = vector.shape_cast %163 : vector<16xf32> to vector<16x1xf32>
    %cst_59 = arith.constant 6.400000e+01 : f32
    %165 = vector.broadcast %cst_59 : f32 to vector<16x1xf32>
    %166 = arith.divf %164, %165 : vector<16x1xf32>
    %167 = vector.broadcast %166 : vector<16x1xf32> to vector<16x64xf32>
    %168 = arith.subf %160, %167 : vector<16x64xf32>
    %169 = arith.mulf %168, %168 : vector<16x64xf32>
    %cst_60 = arith.constant dense<0.000000e+00> : vector<16xf32>
    %170 = vector.multi_reduction <add>, %169, %cst_60 [1] : vector<16x64xf32> to vector<16xf32>
    %171 = vector.shape_cast %170 : vector<16xf32> to vector<16x1xf32>
    %cst_61 = arith.constant 6.400000e+01 : f32
    %172 = vector.broadcast %cst_61 : f32 to vector<16x1xf32>
    %173 = arith.divf %171, %172 : vector<16x1xf32>
    %174 = vector.broadcast %166 : vector<16x1xf32> to vector<16x64xf32>
    %175 = arith.subf %160, %174 : vector<16x64xf32>
    %cst_62 = arith.constant 9.99999996E-13 : f32
    %176 = vector.broadcast %cst_62 : f32 to vector<16x1xf32>
    %177 = arith.addf %173, %176 : vector<16x1xf32>
    %178 = math.rsqrt %177 : vector<16x1xf32>
    %179 = vector.broadcast %178 : vector<16x1xf32> to vector<16x64xf32>
    %180 = arith.mulf %175, %179 : vector<16x64xf32>
    %181 = vector.broadcast %161 : vector<1x64xf32> to vector<16x64xf32>
    %182 = arith.mulf %180, %181 : vector<16x64xf32>
    %183 = vector.broadcast %162 : vector<1x64xf32> to vector<16x64xf32>
    %184 = arith.addf %182, %183 : vector<16x64xf32>
    %c0_63 = arith.constant 0 : index
    %c0_64 = arith.constant 0 : index
    %c0_65 = arith.constant 0 : index
    %185 = vector.load %arg8[%c0_63, %c0_64, %c0_65] : memref<1x64x256xf32, #tpu.memory_space<vmem>>, vector<1x64x256xf32>
    %186 = vector.shape_cast %185 : vector<1x64x256xf32> to vector<64x256xf32>
    %cst_66 = arith.constant dense<0.000000e+00> : vector<16x256xf32>
    %187 = tpu.matmul %184, %186, %cst_66 {dimension_numbers = #tpu.dot_dimension_numbers<[1], [0], [0], [1], [0, 0, 1, 1], [], []>} : vector<16x64xf32>, vector<64x256xf32>, vector<16x256xf32> -> vector<16x256xf32>
    %c0_67 = arith.constant 0 : index
    %c0_68 = arith.constant 0 : index
    %c0_69 = arith.constant 0 : index
    %188 = vector.load %arg9[%c0_67, %c0_68, %c0_69] : memref<1x1x256xf32, #tpu.memory_space<vmem>>, vector<1x1x256xf32>
    %189 = vector.shape_cast %188 : vector<1x1x256xf32> to vector<1x256xf32>
    %190 = vector.broadcast %189 : vector<1x256xf32> to vector<16x256xf32>
    %191 = arith.addf %187, %190 : vector<16x256xf32>
    %cst_70 = arith.constant 5.000000e-01 : f32
    %192 = vector.broadcast %cst_70 : f32 to vector<16x256xf32>
    %193 = arith.mulf %191, %192 : vector<16x256xf32>
    %cst_71 = arith.constant 0.707106769 : f32
    %194 = vector.broadcast %cst_71 : f32 to vector<16x256xf32>
    %195 = arith.mulf %191, %194 : vector<16x256xf32>
    %196 = math.erf %195 : vector<16x256xf32>
    %cst_72 = arith.constant 1.000000e+00 : f32
    %197 = vector.broadcast %cst_72 : f32 to vector<16x256xf32>
    %198 = arith.addf %197, %196 : vector<16x256xf32>
    %199 = arith.mulf %193, %198 : vector<16x256xf32>
    %c0_73 = arith.constant 0 : index
    %c0_74 = arith.constant 0 : index
    %c0_75 = arith.constant 0 : index
    %200 = vector.load %arg10[%c0_73, %c0_74, %c0_75] : memref<1x256x64xf32, #tpu.memory_space<vmem>>, vector<1x256x64xf32>
    %201 = vector.shape_cast %200 : vector<1x256x64xf32> to vector<256x64xf32>
    %cst_76 = arith.constant dense<0.000000e+00> : vector<16x64xf32>
    %202 = tpu.matmul %199, %201, %cst_76 {dimension_numbers = #tpu.dot_dimension_numbers<[1], [0], [0], [1], [0, 0, 1, 1], [], []>} : vector<16x256xf32>, vector<256x64xf32>, vector<16x64xf32> -> vector<16x64xf32>
    %c0_77 = arith.constant 0 : index
    %c0_78 = arith.constant 0 : index
    %c0_79 = arith.constant 0 : index
    %203 = vector.load %arg11[%c0_77, %c0_78, %c0_79] : memref<1x1x64xf32, #tpu.memory_space<vmem>>, vector<1x1x64xf32>
    %204 = vector.shape_cast %203 : vector<1x1x64xf32> to vector<1x64xf32>
    %205 = vector.broadcast %204 : vector<1x64xf32> to vector<16x64xf32>
    %206 = arith.addf %202, %205 : vector<16x64xf32>
    %207 = arith.addf %206, %184 : vector<16x64xf32>
    %208 = vector.extract_strided_slice %5 {offsets = [3, 0], sizes = [1, 64], strides = [1, 1]} : vector<4x64xf32> to vector<1x64xf32>
    %209 = vector.extract_strided_slice %7 {offsets = [3, 0], sizes = [1, 64], strides = [1, 1]} : vector<4x64xf32> to vector<1x64xf32>
    %cst_80 = arith.constant dense<0.000000e+00> : vector<16xf32>
    %210 = vector.multi_reduction <add>, %207, %cst_80 [1] : vector<16x64xf32> to vector<16xf32>
    %211 = vector.shape_cast %210 : vector<16xf32> to vector<16x1xf32>
    %cst_81 = arith.constant 6.400000e+01 : f32
    %212 = vector.broadcast %cst_81 : f32 to vector<16x1xf32>
    %213 = arith.divf %211, %212 : vector<16x1xf32>
    %214 = vector.broadcast %213 : vector<16x1xf32> to vector<16x64xf32>
    %215 = arith.subf %207, %214 : vector<16x64xf32>
    %216 = arith.mulf %215, %215 : vector<16x64xf32>
    %cst_82 = arith.constant dense<0.000000e+00> : vector<16xf32>
    %217 = vector.multi_reduction <add>, %216, %cst_82 [1] : vector<16x64xf32> to vector<16xf32>
    %218 = vector.shape_cast %217 : vector<16xf32> to vector<16x1xf32>
    %cst_83 = arith.constant 6.400000e+01 : f32
    %219 = vector.broadcast %cst_83 : f32 to vector<16x1xf32>
    %220 = arith.divf %218, %219 : vector<16x1xf32>
    %221 = vector.broadcast %213 : vector<16x1xf32> to vector<16x64xf32>
    %222 = arith.subf %207, %221 : vector<16x64xf32>
    %cst_84 = arith.constant 9.99999996E-13 : f32
    %223 = vector.broadcast %cst_84 : f32 to vector<16x1xf32>
    %224 = arith.addf %220, %223 : vector<16x1xf32>
    %225 = math.rsqrt %224 : vector<16x1xf32>
    %226 = vector.broadcast %225 : vector<16x1xf32> to vector<16x64xf32>
    %227 = arith.mulf %222, %226 : vector<16x64xf32>
    %228 = vector.broadcast %208 : vector<1x64xf32> to vector<16x64xf32>
    %229 = arith.mulf %227, %228 : vector<16x64xf32>
    %230 = vector.broadcast %209 : vector<1x64xf32> to vector<16x64xf32>
    %231 = arith.addf %229, %230 : vector<16x64xf32>
    %232 = arith.addf %231, %160 : vector<16x64xf32>
    %c0_85 = arith.constant 0 : index
    %c0_86 = arith.constant 0 : index
    %233 = vector.load %arg14[%c0_85, %c0_86] : memref<16x64xf32, #tpu.memory_space<vmem>>, vector<16x64xf32>
    tpu.vector_store %arg14[%c0_85, %c0_86], %232 {strides = array<i32>} : memref<16x64xf32, #tpu.memory_space<vmem>>, vector<16x64xf32>,
    %234 = vector.shape_cast %232 : vector<16x64xf32> to vector<2x1x8x64xf32>
    %c0_87 = arith.constant 0 : index
    %c0_88 = arith.constant 0 : index
    %c0_89 = arith.constant 0 : index
    %c0_90 = arith.constant 0 : index
    %235 = vector.load %arg13[%c0_87, %c0_88, %c0_89, %c0_90] : memref<2x1x8x64xf32, #tpu.memory_space<vmem>>, vector<2x1x8x64xf32>
    tpu.vector_store %arg13[%c0_87, %c0_88, %c0_89, %c0_90], %234 {strides = array<i32>} : memref<2x1x8x64xf32, #tpu.memory_space<vmem>>, vector<2x1x8x64xf32>,
    return
  }
  func.func @transform_0(%arg0: i32, %arg1: i32) -> (i32, i32, i32) {
    %c0_i32 = arith.constant 0 : i32
    %c0_i32_0 = arith.constant 0 : i32
    %c0_i32_1 = arith.constant 0 : i32
    return %arg0, %c0_i32, %c0_i32_0 : i32, i32, i32
  }
  func.func @transform_1(%arg0: i32, %arg1: i32) -> (i32, i32, i32) {
    %c0_i32 = arith.constant 0 : i32
    %c0_i32_0 = arith.constant 0 : i32
    %c0_i32_1 = arith.constant 0 : i32
    return %arg0, %c0_i32, %c0_i32_0 : i32, i32, i32
  }
  func.func @transform_2(%arg0: i32, %arg1: i32) -> (i32, i32, i32) {
    %c0_i32 = arith.constant 0 : i32
    %c0_i32_0 = arith.constant 0 : i32
    %c0_i32_1 = arith.constant 0 : i32
    return %arg1, %c0_i32, %c0_i32_0 : i32, i32, i32
  }
  func.func @transform_3(%arg0: i32, %arg1: i32) -> (i32, i32, i32) {
    %c0_i32 = arith.constant 0 : i32
    %c0_i32_0 = arith.constant 0 : i32
    %c0_i32_1 = arith.constant 0 : i32
    return %arg1, %c0_i32, %c0_i32_0 : i32, i32, i32
  }
  func.func @transform_4(%arg0: i32, %arg1: i32) -> (i32, i32, i32, i32) {
    %c0_i32 = arith.constant 0 : i32
    %c0_i32_0 = arith.constant 0 : i32
    %c0_i32_1 = arith.constant 0 : i32
    %c0_i32_2 = arith.constant 0 : i32
    return %arg1, %c0_i32, %c0_i32_0, %c0_i32_1 : i32, i32, i32, i32
  }
  func.func @transform_5(%arg0: i32, %arg1: i32) -> (i32, i32, i32) {
    %c0_i32 = arith.constant 0 : i32
    %c0_i32_0 = arith.constant 0 : i32
    %c0_i32_1 = arith.constant 0 : i32
    return %arg1, %c0_i32, %c0_i32_0 : i32, i32, i32
  }
  func.func @transform_6(%arg0: i32, %arg1: i32) -> (i32, i32, i32) {
    %c0_i32 = arith.constant 0 : i32
    %c0_i32_0 = arith.constant 0 : i32
    %c0_i32_1 = arith.constant 0 : i32
    return %arg1, %c0_i32, %c0_i32_0 : i32, i32, i32
  }
  func.func @transform_7(%arg0: i32, %arg1: i32) -> (i32, i32, i32) {
    %c0_i32 = arith.constant 0 : i32
    %c0_i32_0 = arith.constant 0 : i32
    %c0_i32_1 = arith.constant 0 : i32
    return %arg1, %c0_i32, %c0_i32_0 : i32, i32, i32
  }
  func.func @transform_8(%arg0: i32, %arg1: i32) -> (i32, i32, i32) {
    %c0_i32 = arith.constant 0 : i32
    %c0_i32_0 = arith.constant 0 : i32
    %c0_i32_1 = arith.constant 0 : i32
    return %arg1, %c0_i32, %c0_i32_0 : i32, i32, i32
  }
  func.func @transform_9(%arg0: i32, %arg1: i32) -> (i32, i32, i32) {
    %c0_i32 = arith.constant 0 : i32
    %c0_i32_0 = arith.constant 0 : i32
    %c0_i32_1 = arith.constant 0 : i32
    return %arg1, %c0_i32, %c0_i32_0 : i32, i32, i32
  }
  func.func @transform_10(%arg0: i32, %arg1: i32) -> (i32, i32) {
    %c0_i32 = arith.constant 0 : i32
    %c0_i32_0 = arith.constant 0 : i32
    %c0_i32_1 = arith.constant 0 : i32
    return %c0_i32, %c0_i32_0 : i32, i32
  }
  func.func @transform_11(%arg0: i32, %arg1: i32) -> (i32, i32, i32, i32) {
    %c0_i32 = arith.constant 0 : i32
    %c0_i32_0 = arith.constant 0 : i32
    %c0_i32_1 = arith.constant 0 : i32
    return %arg0, %arg1, %c0_i32, %c0_i32_0 : i32, i32, i32, i32
  }
}

</mosaic_0001>

<llo_original>
// kernel: tpu_custom_call.1
$region0: #{tpu_custom_call.1}
  #allocation0 [shape = 'u32[]', space=smem, size = 0x4, offset = 0x4, fixed_abs, tag = 'smem constant byte address 0x4 - core index']
  #allocation1 [shape = 'u32[144,128]{1,0:T(1,128)}', space=vmem, size = 0x12000, scoped, tag = 'internal scratch']
  #allocation2 [shape = 'f32[16,64]{1,0:T(8,128)}', space=vmem, size = 0x2000, scoped, tag = 'scratch operand']
  #allocation3 [shape = 'f32[16,64]{1,0:T(8,128)}', space=vmem, size = 0x2000, scoped, tag = 'scratch operand']
  %s0 = inlined_call_operand.hbm [shape: f32[2,8,64], index: 0, kind: input, shape index: {}]
  %s1 = inlined_call_operand.hbm [shape: f32[2,8,8], index: 1, kind: input, shape index: {}]
  %s2 = inlined_call_operand.vmem [shape: f32[2,4,64], index: 2, kind: input, shape index: {}]
  %s3 = inlined_call_operand.hbm [shape: f32[2,4,64], index: 3, kind: input, shape index: {}]
  %s4 = inlined_call_operand.vmem [shape: f32[2,4,64,64], index: 4, kind: input, shape index: {}]
  %s5 = inlined_call_operand.hbm [shape: f32[2,4,64], index: 5, kind: input, shape index: {}]
  %s6 = inlined_call_operand.vmem [shape: f32[2,64,256], index: 6, kind: input, shape index: {}]
  %s7 = inlined_call_operand.vmem [shape: f32[2,1,256], index: 7, kind: input, shape index: {}]
  %s8 = inlined_call_operand.vmem [shape: f32[2,256,64], index: 8, kind: input, shape index: {}]
  %s9 = inlined_call_operand.vmem [shape: f32[2,1,64], index: 9, kind: input, shape index: {}]
  %s10 = inlined_call_operand.vmem [shape: f32[2,64], index: 10, kind: input, shape index: {}]
  %s11 = inlined_call_operand.hbm [shape: f32[2,2,8,64], index: 11, kind: output, shape index: {}]
  %s12 = sld [smem:[#allocation0]]
  $region97: #{tpu_custom_call.1} parent=0
    _
  %s14 = ssub.s32 1, %s12
  %s15 = scalar_select 0, %s14, %s12
  $region1: #{tpu_custom_call.1} parent=0
    #allocation4 [shape = 'u8[8192]{0}', space=vmem, size = 0x2000, scoped, tag = 'input window, operand 0, single buffered']
    #allocation5 [shape = 's32[2]{0}', space=sflag, size = 0x8, scoped, tag = 'scoped memory for tpu_custom_call.1']
    #allocation6 [shape = 's32[2]{0}', space=sflag, size = 0x8, scoped, tag = 'scoped memory for tpu_custom_call.1']
    #allocation7 [shape = 'u8[8192]{0}', space=vmem, size = 0x2000, scoped, tag = 'input window, operand 1, single buffered']
    #allocation8 [shape = 's32[1]{0}', space=sflag, size = 0x4, scoped, tag = 'scoped memory for tpu_custom_call.1']
    #allocation9 [shape = 'u8[4096]{0}', space=vmem, size = 0x1000, scoped, tag = 'input window, operand 3']
    #allocation10 [shape = 'u8[4096]{0}', space=vmem, size = 0x1000, scoped, tag = 'input window, operand 5']
    #allocation11 [shape = 'u8[16384]{0}', space=vmem, size = 0x4000, scoped, tag = 'output window, operand 0']
    %16 = vsyncpa [#allocation5], 0
    %17 = vsyncpa [#allocation8], 0
    %18 = vsyncpa [#allocation6], 0
    %s19 = scalar_lea.sflag [#allocation6], 1
    %20 = vsyncpa %s19, 0
    loop: start=0, step=1, limit=4
    $region2: #{tpu_custom_call.1} parent=1 // loop_pre_header
      _
    $region3: #{tpu_custom_call.1} parent=1 // loop_header
      %s22 = sphi 0, %s26
      %p23 = scmp.ge.s32.totalorder %s22, 4
      %s29 = sphi 0, %s41
      %s30 = sphi 0, %s37
      %s31 = sphi 0, %s29
      %s32 = sphi 0, %s30
      %s33 = sphi 0, %s31
      %s34 = sphi 0, %s32
      %s44 = sphi 0, %s46
      %s47 = sphi 0, %s44
      %s48 = sphi 0, %s47
      %s64 = sphi 0, %s48
      %s70 = sphi 0, %s72
      %s73 = sphi 0, %s70
      %s74 = sphi 0, %s73
      %s90 = sphi 0, %s74
      %s96 = sphi 0, %s98
      %s99 = sphi 0, %s96
      %s100 = sphi 0, %s99
      %s116 = sphi 0, %s100
      %s122 = sphi 0, %s124
      %s125 = sphi 0, %s122
      %s126 = sphi 0, %s125
      %s142 = sphi 0, %s126
      %s148 = sphi 0, %s150
      %s151 = sphi 0, %s148
      %s152 = sphi 0, %s151
      %s168 = sphi 0, %s152
      %s174 = sphi 0, %s176
      %s177 = sphi 0, %s174
      %s178 = sphi 0, %s177
      %s194 = sphi 0, %s178
      %s200 = sphi 0, %s202
      %s203 = sphi 0, %s200
      %s204 = sphi 0, %s203
      %s220 = sphi 0, %s204
      %s226 = sphi 0, %s228
      %s229 = sphi 0, %s226
      %s230 = sphi 0, %s229
      %s246 = sphi 0, %s230
      %s252 = sphi 0, %s254
      %s255 = sphi 0, %s252
      %s256 = sphi 0, %s255
      %s272 = sphi 0, %s256
      %s278 = sphi 0, %s280
      %s281 = sphi 0, %s278
      %s282 = sphi 0, %s281
      %s298 = sphi 0, %s282
      %s302 = sphi 0, %s302
      %s304 = sphi 0, %s302
      %s305 = sphi 0, %s304
      %s319 = sphi 0, %s305
      %s327 = sphi 0, %s329
      %s330 = sphi 0, %s327
      %s331 = sphi 0, %s330
      %s347 = sphi 0, %s331
    $region4: #{tpu_custom_call.1} parent=1 // loop_header_branch
      %25 = sbr.rel (%p23) target = $region8
    $region5: #{tpu_custom_call.1} parent=1 // loop_body
      %s27 = ssub.s32 %s22, 1
      %s28 = ssub.s32 %s22, 2
      %s35 = sadd.s32 1, %s30
      %p36 = scmp.ge.s32.totalorder %s35, 2
      %s37 = scalar_select %p36, 0, %s35
      %s38 = sadd.s32 1, %s29
      %s39 = scalar_select %p36, %s38, %s29
      %p40 = scmp.ge.s32.totalorder %s39, 1
      %s41 = scalar_select %p40, 0, %s39
      %s42 = ssub.s32 %s29, %s41
      %p43 = scmp.eq.s32.totalorder %s42, 0
      %s45 = sadd.s32 %s44, 1
      %s46 = scalar_select %p43, %s44, %s45
      %p49 = pneg %p43
      %p50 = scmp.eq.s32.totalorder %s22, 1
      %p51 = por %p49, %p50
      %p52 = scmp.ne.s32.totalorder %s44, %s47
      %p53 = scmp.eq.s32.totalorder %s22, 0
      %p54 = por %p52, %p53
      %p55 = scmp.ne.s32.totalorder %s44, %s47
      %p56 = scmp.eq.s32.totalorder %s27, 1
      %p57 = por %p55, %p56
      %p58 = scmp.ne.s32.totalorder %s47, %s48
      %p59 = scmp.eq.s32.totalorder %s27, 0
      %p60 = por %p58, %p59
      %p61 = scmp.ne.s32.totalorder %s47, %s48
      %p62 = scmp.eq.s32.totalorder %s28, 1
      %p63 = por %p61, %p62
      %p65 = scmp.ne.s32.totalorder %s48, %s64
      %p66 = scmp.eq.s32.totalorder %s28, 0
      %p67 = por %p65, %p66
      %s68 = ssub.s32 %s29, %s41
      %p69 = scmp.eq.s32.totalorder %s68, 0
      %s71 = sadd.s32 %s70, 1
      %s72 = scalar_select %p69, %s70, %s71
      %p75 = pneg %p69
      %p76 = scmp.eq.s32.totalorder %s22, 1
      %p77 = por %p75, %p76
      %p78 = scmp.ne.s32.totalorder %s70, %s73
      %p79 = scmp.eq.s32.totalorder %s22, 0
      %p80 = por %p78, %p79
      %p81 = scmp.ne.s32.totalorder %s70, %s73
      %p82 = scmp.eq.s32.totalorder %s27, 1
      %p83 = por %p81, %p82
      %p84 = scmp.ne.s32.totalorder %s73, %s74
      %p85 = scmp.eq.s32.totalorder %s27, 0
      %p86 = por %p84, %p85
      %p87 = scmp.ne.s32.totalorder %s73, %s74
      %p88 = scmp.eq.s32.totalorder %s28, 1
      %p89 = por %p87, %p88
      %p91 = scmp.ne.s32.totalorder %s74, %s90
      %p92 = scmp.eq.s32.totalorder %s28, 0
      %p93 = por %p91, %p92
      %s94 = ssub.s32 %s30, %s37
      %p95 = scmp.eq.s32.totalorder %s94, 0
      %s97 = sadd.s32 %s96, 1
      %s98 = scalar_select %p95, %s96, %s97
      %p101 = pneg %p95
      %p102 = scmp.eq.s32.totalorder %s22, 1
      %p103 = por %p101, %p102
      %p104 = scmp.ne.s32.totalorder %s96, %s99
      %p105 = scmp.eq.s32.totalorder %s22, 0
      %p106 = por %p104, %p105
      %p107 = scmp.ne.s32.totalorder %s96, %s99
      %p108 = scmp.eq.s32.totalorder %s27, 1
      %p109 = por %p107, %p108
      %p110 = scmp.ne.s32.totalorder %s99, %s100
      %p111 = scmp.eq.s32.totalorder %s27, 0
      %p112 = por %p110, %p111
      %p113 = scmp.ne.s32.totalorder %s99, %s100
      %p114 = scmp.eq.s32.totalorder %s28, 1
      %p115 = por %p113, %p114
      %p117 = scmp.ne.s32.totalorder %s100, %s116
      %p118 = scmp.eq.s32.totalorder %s28, 0
      %p119 = por %p117, %p118
      %s120 = ssub.s32 %s30, %s37
      %p121 = scmp.eq.s32.totalorder %s120, 0
      %s123 = sadd.s32 %s122, 1
      %s124 = scalar_select %p121, %s122, %s123
      %p127 = pneg %p121
      %p128 = scmp.eq.s32.totalorder %s22, 1
      %p129 = por %p127, %p128
      %p130 = scmp.ne.s32.totalorder %s122, %s125
      %p131 = scmp.eq.s32.totalorder %s22, 0
      %p132 = por %p130, %p131
      %p133 = scmp.ne.s32.totalorder %s122, %s125
      %p134 = scmp.eq.s32.totalorder %s27, 1
      %p135 = por %p133, %p134
      %p136 = scmp.ne.s32.totalorder %s125, %s126
      %p137 = scmp.eq.s32.totalorder %s27, 0
      %p138 = por %p136, %p137
      %p139 = scmp.ne.s32.totalorder %s125, %s126
      %p140 = scmp.eq.s32.totalorder %s28, 1
      %p141 = por %p139, %p140
      %p143 = scmp.ne.s32.totalorder %s126, %s142
      %p144 = scmp.eq.s32.totalorder %s28, 0
      %p145 = por %p143, %p144
      %s146 = ssub.s32 %s30, %s37
      %p147 = scmp.eq.s32.totalorder %s146, 0
      %s149 = sadd.s32 %s148, 1
      %s150 = scalar_select %p147, %s148, %s149
      %p153 = pneg %p147
      %p154 = scmp.eq.s32.totalorder %s22, 1
      %p155 = por %p153, %p154
      %p156 = scmp.ne.s32.totalorder %s148, %s151
      %p157 = scmp.eq.s32.totalorder %s22, 0
      %p158 = por %p156, %p157
      %p159 = scmp.ne.s32.totalorder %s148, %s151
      %p160 = scmp.eq.s32.totalorder %s27, 1
      %p161 = por %p159, %p160
      %p162 = scmp.ne.s32.totalorder %s151, %s152
      %p163 = scmp.eq.s32.totalorder %s27, 0
      %p164 = por %p162, %p163
      %p165 = scmp.ne.s32.totalorder %s151, %s152
      %p166 = scmp.eq.s32.totalorder %s28, 1
      %p167 = por %p165, %p166
      %p169 = scmp.ne.s32.totalorder %s152, %s168
      %p170 = scmp.eq.s32.totalorder %s28, 0
      %p171 = por %p169, %p170
      %s172 = ssub.s32 %s30, %s37
      %p173 = scmp.eq.s32.totalorder %s172, 0
      %s175 = sadd.s32 %s174, 1
      %s176 = scalar_select %p173, %s174, %s175
      %p179 = pneg %p173
      %p180 = scmp.eq.s32.totalorder %s22, 1
      %p181 = por %p179, %p180
      %p182 = scmp.ne.s32.totalorder %s174, %s177
      %p183 = scmp.eq.s32.totalorder %s22, 0
      %p184 = por %p182, %p183
      %p185 = scmp.ne.s32.totalorder %s174, %s177
      %p186 = scmp.eq.s32.totalorder %s27, 1
      %p187 = por %p185, %p186
      %p188 = scmp.ne.s32.totalorder %s177, %s178
      %p189 = scmp.eq.s32.totalorder %s27, 0
      %p190 = por %p188, %p189
      %p191 = scmp.ne.s32.totalorder %s177, %s178
      %p192 = scmp.eq.s32.totalorder %s28, 1
      %p193 = por %p191, %p192
      %p195 = scmp.ne.s32.totalorder %s178, %s194
      %p196 = scmp.eq.s32.totalorder %s28, 0
      %p197 = por %p195, %p196
      %s198 = ssub.s32 %s30, %s37
      %p199 = scmp.eq.s32.totalorder %s198, 0
      %s201 = sadd.s32 %s200, 1
      %s202 = scalar_select %p199, %s200, %s201
      %p205 = pneg %p199
      %p206 = scmp.eq.s32.totalorder %s22, 1
      %p207 = por %p205, %p206
      %p208 = scmp.ne.s32.totalorder %s200, %s203
      %p209 = scmp.eq.s32.totalorder %s22, 0
      %p210 = por %p208, %p209
      %p211 = scmp.ne.s32.totalorder %s200, %s203
      %p212 = scmp.eq.s32.totalorder %s27, 1
      %p213 = por %p211, %p212
      %p214 = scmp.ne.s32.totalorder %s203, %s204
      %p215 = scmp.eq.s32.totalorder %s27, 0
      %p216 = por %p214, %p215
      %p217 = scmp.ne.s32.totalorder %s203, %s204
      %p218 = scmp.eq.s32.totalorder %s28, 1
      %p219 = por %p217, %p218
      %p221 = scmp.ne.s32.totalorder %s204, %s220
      %p222 = scmp.eq.s32.totalorder %s28, 0
      %p223 = por %p221, %p222
      %s224 = ssub.s32 %s30, %s37
      %p225 = scmp.eq.s32.totalorder %s224, 0
      %s227 = sadd.s32 %s226, 1
      %s228 = scalar_select %p225, %s226, %s227
      %p231 = pneg %p225
      %p232 = scmp.eq.s32.totalorder %s22, 1
      %p233 = por %p231, %p232
      %p234 = scmp.ne.s32.totalorder %s226, %s229
      %p235 = scmp.eq.s32.totalorder %s22, 0
      %p236 = por %p234, %p235
      %p237 = scmp.ne.s32.totalorder %s226, %s229
      %p238 = scmp.eq.s32.totalorder %s27, 1
      %p239 = por %p237, %p238
      %p240 = scmp.ne.s32.totalorder %s229, %s230
      %p241 = scmp.eq.s32.totalorder %s27, 0
      %p242 = por %p240, %p241
      %p243 = scmp.ne.s32.totalorder %s229, %s230
      %p244 = scmp.eq.s32.totalorder %s28, 1
      %p245 = por %p243, %p244
      %p247 = scmp.ne.s32.totalorder %s230, %s246
      %p248 = scmp.eq.s32.totalorder %s28, 0
      %p249 = por %p247, %p248
      %s250 = ssub.s32 %s30, %s37
      %p251 = scmp.eq.s32.totalorder %s250, 0
      %s253 = sadd.s32 %s252, 1
      %s254 = scalar_select %p251, %s252, %s253
      %p257 = pneg %p251
      %p258 = scmp.eq.s32.totalorder %s22, 1
      %p259 = por %p257, %p258
      %p260 = scmp.ne.s32.totalorder %s252, %s255
      %p261 = scmp.eq.s32.totalorder %s22, 0
      %p262 = por %p260, %p261
      %p263 = scmp.ne.s32.totalorder %s252, %s255
      %p264 = scmp.eq.s32.totalorder %s27, 1
      %p265 = por %p263, %p264
      %p266 = scmp.ne.s32.totalorder %s255, %s256
      %p267 = scmp.eq.s32.totalorder %s27, 0
      %p268 = por %p266, %p267
      %p269 = scmp.ne.s32.totalorder %s255, %s256
      %p270 = scmp.eq.s32.totalorder %s28, 1
      %p271 = por %p269, %p270
      %p273 = scmp.ne.s32.totalorder %s256, %s272
      %p274 = scmp.eq.s32.totalorder %s28, 0
      %p275 = por %p273, %p274
      %s276 = ssub.s32 %s30, %s37
      %p277 = scmp.eq.s32.totalorder %s276, 0
      %s279 = sadd.s32 %s278, 1
      %s280 = scalar_select %p277, %s278, %s279
      %p283 = pneg %p277
      %p284 = scmp.eq.s32.totalorder %s22, 1
      %p285 = por %p283, %p284
      %p286 = scmp.ne.s32.totalorder %s278, %s281
      %p287 = scmp.eq.s32.totalorder %s22, 0
      %p288 = por %p286, %p287
      %p289 = scmp.ne.s32.totalorder %s278, %s281
      %p290 = scmp.eq.s32.totalorder %s27, 1
      %p291 = por %p289, %p290
      %p292 = scmp.ne.s32.totalorder %s281, %s282
      %p293 = scmp.eq.s32.totalorder %s27, 0
      %p294 = por %p292, %p293
      %p295 = scmp.ne.s32.totalorder %s281, %s282
      %p296 = scmp.eq.s32.totalorder %s28, 1
      %p297 = por %p295, %p296
      %p299 = scmp.ne.s32.totalorder %s282, %s298
      %p300 = scmp.eq.s32.totalorder %s28, 0
      %p301 = por %p299, %p300
      %s303 = sadd.s32 %s302, 1
      %p306 = scmp.eq.s32.totalorder %s22, 1
      %p307 = scmp.ne.s32.totalorder %s302, %s304
      %p308 = scmp.eq.s32.totalorder %s22, 0
      %p309 = por %p307, %p308
      %p310 = scmp.ne.s32.totalorder %s302, %s304
      %p311 = scmp.eq.s32.totalorder %s27, 1
      %p312 = por %p310, %p311
      %p313 = scmp.ne.s32.totalorder %s304, %s305
      %p314 = scmp.eq.s32.totalorder %s27, 0
      %p315 = por %p313, %p314
      %p316 = scmp.ne.s32.totalorder %s304, %s305
      %p317 = scmp.eq.s32.totalorder %s28, 1
      %p318 = por %p316, %p317
      %p320 = scmp.ne.s32.totalorder %s305, %s319
      %p321 = scmp.eq.s32.totalorder %s28, 0
      %p322 = por %p320, %p321
      %s323 = ssub.s32 %s29, %s41
      %s324 = ssub.s32 %s30, %s37
      %s325 = sor.u32 %s323, %s324
      %p326 = scmp.eq.s32.totalorder %s325, 0
      %s328 = sadd.s32 %s327, 1
      %s329 = scalar_select %p326, %s327, %s328
      %p332 = pneg %p326
      %p333 = scmp.eq.s32.totalorder %s22, 1
      %p334 = por %p332, %p333
      %p335 = scmp.ne.s32.totalorder %s327, %s330
      %p336 = scmp.eq.s32.totalorder %s22, 0
      %p337 = por %p335, %p336
      %p338 = scmp.ne.s32.totalorder %s327, %s330
      %p339 = scmp.eq.s32.totalorder %s27, 1
      %p340 = por %p338, %p339
      %p341 = scmp.ne.s32.totalorder %s330, %s331
      %p342 = scmp.eq.s32.totalorder %s27, 0
      %p343 = por %p341, %p342
      %p344 = scmp.ne.s32.totalorder %s330, %s331
      %p345 = scmp.eq.s32.totalorder %s28, 1
      %p346 = por %p344, %p345
      %p348 = scmp.ne.s32.totalorder %s331, %s347
      %p349 = scmp.eq.s32.totalorder %s28, 0
      %p350 = por %p348, %p349
      %p351 = scmp.le.s32.totalorder 1, %s22
      %p352 = scmp.lt.s32.totalorder %s22, 3
      %p353 = pnand %p351, %p352
      %p354 = pneg %p353
      // Predicated region
      $region9: #{tpu_custom_call.1} parent=5 // pred_check
        _
      $region10: #{tpu_custom_call.1} parent=5 // pred_check_branch
        %356 = sbr.rel (%p353) target = $region12
      $region11: #{tpu_custom_call.1} parent=5 // pred_region
        %s357 = ssub.s32 %s22, 1
        // Predicated region
        $region13: #{tpu_custom_call.1} parent=11 // pred_check
          %p358 = pneg %p60
        $region14: #{tpu_custom_call.1} parent=11 // pred_check_branch
          %360 = sbr.rel (%p358) target = $region16
        $region15: #{tpu_custom_call.1} parent=11 // pred_region
          %s361 = smul.u32 2, %s31
          %s363 = ssub.s32 256, 256
          %364 = vsyncadd [#allocation5], %s363
          %s365 = smul.addr %s361, 128
          %s366 = scalar_lea.hbm %s0, %s365
          %s367 = sshll.u32 [#allocation4], 4
          %s368 = int_to_ptr.vmem [resolvable:$true] %s367
          %373 = dma.hbm_to_vmem [thread:$0]  %s366, 256, %s368, [#allocation5], 128, 128, 8
        $region16: #{tpu_custom_call.1} parent=11 // pred_fallthru
          _
        // Predicated region
        $region17: #{tpu_custom_call.1} parent=11 // pred_check
          %p374 = pneg %p86
        $region18: #{tpu_custom_call.1} parent=11 // pred_check_branch
          %376 = sbr.rel (%p374) target = $region20
        $region19: #{tpu_custom_call.1} parent=11 // pred_region
          %s377 = smul.u32 2, %s31
          %s379 = ssub.s32 256, 256
          %380 = vsyncadd [#allocation8], %s379
          %s381 = smul.addr %s377, 128
          %s382 = scalar_lea.hbm %s1, %s381
          %s383 = sshll.u32 [#allocation7], 4
          %s384 = int_to_ptr.vmem [resolvable:$true] %s383
          %389 = dma.hbm_to_vmem [thread:$0]  %s382, 256, %s384, [#allocation8], 128, 128, 8
        $region20: #{tpu_custom_call.1} parent=11 // pred_fallthru
          _
        // Predicated region
        $region21: #{tpu_custom_call.1} parent=11 // pred_check
          %p390 = pneg %p315
        $region22: #{tpu_custom_call.1} parent=11 // pred_check_branch
          %392 = sbr.rel (%p390) target = $region24
        $region23: #{tpu_custom_call.1} parent=11 // pred_region
          _
        $region24: #{tpu_custom_call.1} parent=11 // pred_fallthru
          _
      $region12: #{tpu_custom_call.1} parent=5 // pred_fallthru
        _
      %p393 = scmp.lt.s32.totalorder %s22, 2
      // Predicated region
      $region25: #{tpu_custom_call.1} parent=5 // pred_check
        %p394 = pneg %p393
      $region26: #{tpu_custom_call.1} parent=5 // pred_check_branch
        %396 = sbr.rel (%p394) target = $region28
      $region27: #{tpu_custom_call.1} parent=5 // pred_region
        // Predicated region
        $region29: #{tpu_custom_call.1} parent=27 // pred_check
          %p397 = pneg %p106
        $region30: #{tpu_custom_call.1} parent=27 // pred_check_branch
          %399 = sbr.rel (%p397) target = $region32
        $region31: #{tpu_custom_call.1} parent=27 // pred_region
          %p400 = scmp.lt.s32.totalorder %s30, 1
          %s401 = scalar_select %p400, %s30, 1
          %s402 = smul.addr %s401, 4
          %s403 = scalar_lea.vmem %s2, %s402
        $region32: #{tpu_custom_call.1} parent=27 // pred_fallthru
          _
        // Predicated region
        $region33: #{tpu_custom_call.1} parent=27 // pred_check
          %p404 = pneg %p132
        $region34: #{tpu_custom_call.1} parent=27 // pred_check_branch
          %406 = sbr.rel (%p404) target = $region36
        $region35: #{tpu_custom_call.1} parent=27 // pred_region
          %s407 = sand.u32 %s22, 1
          %s408 = scalar_lea.sflag [#allocation5], %s407
          %s409 = sand.u32 %s122, 1
          %s410 = smul.addr %s409, 4
          %s411 = scalar_lea.vmem [#allocation9], %s410
          %s413 = ssub.s32 64, 64
          %414 = vsyncadd %s408, %s413
          %s415 = smul.addr %s30, 64
          %s416 = scalar_lea.hbm %s3, %s415
          %s418 = sshll.u32 %s411, 4
          %s419 = int_to_ptr.vmem [resolvable:$true] %s418
          %421 = dma.hbm_to_vmem [thread:$0]  %s416, 64, %s419, %s408
        $region36: #{tpu_custom_call.1} parent=27 // pred_fallthru
          _
        // Predicated region
        $region37: #{tpu_custom_call.1} parent=27 // pred_check
          %p422 = pneg %p158
        $region38: #{tpu_custom_call.1} parent=27 // pred_check_branch
          %424 = sbr.rel (%p422) target = $region40
        $region39: #{tpu_custom_call.1} parent=27 // pred_region
          %p425 = scmp.lt.s32.totalorder %s30, 1
          %s426 = scalar_select %p425, %s30, 1
          %s427 = smul.addr %s426, 32
          %s428 = smul.addr %s427, 8
          %s429 = scalar_lea.vmem %s4, %s428
        $region40: #{tpu_custom_call.1} parent=27 // pred_fallthru
          _
        // Predicated region
        $region41: #{tpu_custom_call.1} parent=27 // pred_check
          %p430 = pneg %p184
        $region42: #{tpu_custom_call.1} parent=27 // pred_check_branch
          %432 = sbr.rel (%p430) target = $region44
        $region43: #{tpu_custom_call.1} parent=27 // pred_region
          %s433 = sand.u32 %s22, 1
          %s434 = scalar_lea.sflag [#allocation5], %s433
          %s435 = sand.u32 %s174, 1
          %s436 = smul.addr %s435, 4
          %s437 = scalar_lea.vmem [#allocation10], %s436
          %s439 = ssub.s32 64, 64
          %440 = vsyncadd %s434, %s439
          %s441 = smul.addr %s30, 64
          %s442 = scalar_lea.hbm %s5, %s441
          %s444 = sshll.u32 %s437, 4
          %s445 = int_to_ptr.vmem [resolvable:$true] %s444
          %447 = dma.hbm_to_vmem [thread:$0]  %s442, 64, %s445, %s434
        $region44: #{tpu_custom_call.1} parent=27 // pred_fallthru
          _
        // Predicated region
        $region45: #{tpu_custom_call.1} parent=27 // pred_check
          %p448 = pneg %p210
        $region46: #{tpu_custom_call.1} parent=27 // pred_check_branch
          %450 = sbr.rel (%p448) target = $region48
        $region47: #{tpu_custom_call.1} parent=27 // pred_region
          %p451 = scmp.lt.s32.totalorder %s30, 1
          %s452 = scalar_select %p451, %s30, 1
          %s453 = smul.addr %s452, 16
          %s454 = smul.addr %s453, 8
          %s455 = scalar_lea.vmem %s6, %s454
        $region48: #{tpu_custom_call.1} parent=27 // pred_fallthru
          _
        // Predicated region
        $region49: #{tpu_custom_call.1} parent=27 // pred_check
          %p456 = pneg %p236
        $region50: #{tpu_custom_call.1} parent=27 // pred_check_branch
          %458 = sbr.rel (%p456) target = $region52
        $region51: #{tpu_custom_call.1} parent=27 // pred_region
          %p459 = scmp.lt.s32.totalorder %s30, 1
          %s460 = scalar_select %p459, %s30, 1
          %s461 = smul.addr %s460, 2
          %s462 = scalar_lea.vmem %s7, %s461
        $region52: #{tpu_custom_call.1} parent=27 // pred_fallthru
          _
        // Predicated region
        $region53: #{tpu_custom_call.1} parent=27 // pred_check
          %p463 = pneg %p262
        $region54: #{tpu_custom_call.1} parent=27 // pred_check_branch
          %465 = sbr.rel (%p463) target = $region56
        $region55: #{tpu_custom_call.1} parent=27 // pred_region
          %p466 = scmp.lt.s32.totalorder %s30, 1
          %s467 = scalar_select %p466, %s30, 1
          %s468 = smul.addr %s467, 32
          %s469 = smul.addr %s468, 8
          %s470 = scalar_lea.vmem %s8, %s469
        $region56: #{tpu_custom_call.1} parent=27 // pred_fallthru
          _
        // Predicated region
        $region57: #{tpu_custom_call.1} parent=27 // pred_check
          %p471 = pneg %p288
        $region58: #{tpu_custom_call.1} parent=27 // pred_check_branch
          %473 = sbr.rel (%p471) target = $region60
        $region59: #{tpu_custom_call.1} parent=27 // pred_region
          %p474 = scmp.lt.s32.totalorder %s30, 1
          %s475 = scalar_select %p474, %s30, 1
          %s476 = scalar_lea.vmem %s9, %s475
        $region60: #{tpu_custom_call.1} parent=27 // pred_fallthru
          _
      $region28: #{tpu_custom_call.1} parent=5 // pred_fallthru
        _
      %p477 = scmp.le.s32.totalorder 1, %s22
      %p478 = scmp.lt.s32.totalorder %s22, 3
      %p479 = pnand %p477, %p478
      %p480 = pneg %p479
      // Predicated region
      $region61: #{tpu_custom_call.1} parent=5 // pred_check
        _
      $region62: #{tpu_custom_call.1} parent=5 // pred_check_branch
        %482 = sbr.rel (%p479) target = $region64
      $region63: #{tpu_custom_call.1} parent=5 // pred_region
        %s483 = ssub.s32 %s22, 1
        // Predicated region
        $region65: #{tpu_custom_call.1} parent=63 // pred_check
          %p484 = pneg %p60
        $region66: #{tpu_custom_call.1} parent=63 // pred_check_branch
          %486 = sbr.rel (%p484) target = $region68
        $region67: #{tpu_custom_call.1} parent=63 // pred_region
          %487 = dma.done [#allocation5], 256
        $region68: #{tpu_custom_call.1} parent=63 // pred_fallthru
          _
        // Predicated region
        $region69: #{tpu_custom_call.1} parent=63 // pred_check
          %p488 = pneg %p86
        $region70: #{tpu_custom_call.1} parent=63 // pred_check_branch
          %490 = sbr.rel (%p488) target = $region72
        $region71: #{tpu_custom_call.1} parent=63 // pred_region
          %491 = dma.done [#allocation8], 256
        $region72: #{tpu_custom_call.1} parent=63 // pred_fallthru
          _
        %s492 = sand.u32 %s27, 1
        %s493 = scalar_lea.sflag [#allocation5], %s492
        %s494 = sand.u32 %s125, 1
        %s495 = smul.addr %s494, 4
        %s496 = scalar_lea.vmem [#allocation9], %s495
        // Predicated region
        $region73: #{tpu_custom_call.1} parent=63 // pred_check
          %p497 = pneg %p138
        $region74: #{tpu_custom_call.1} parent=63 // pred_check_branch
          %499 = sbr.rel (%p497) target = $region76
        $region75: #{tpu_custom_call.1} parent=63 // pred_region
          %500 = dma.done %s493, 64
        $region76: #{tpu_custom_call.1} parent=63 // pred_fallthru
          _
        %s501 = sand.u32 %s27, 1
        %s502 = scalar_lea.sflag [#allocation5], %s501
        %s503 = sand.u32 %s177, 1
        %s504 = smul.addr %s503, 4
        %s505 = scalar_lea.vmem [#allocation10], %s504
        // Predicated region
        $region77: #{tpu_custom_call.1} parent=63 // pred_check
          %p506 = pneg %p190
        $region78: #{tpu_custom_call.1} parent=63 // pred_check_branch
          %508 = sbr.rel (%p506) target = $region80
        $region79: #{tpu_custom_call.1} parent=63 // pred_region
          %509 = dma.done %s502, 64
        $region80: #{tpu_custom_call.1} parent=63 // pred_fallthru
          _
        %p510 = pneg %p60
        %p511 = pneg %p57
        %p512 = pneg %p86
        %p513 = pneg %p83
        %p514 = scmp.lt.s32.totalorder %s32, 1
        %s515 = scalar_select %p514, %s32, 1
        %s516 = smul.addr %s515, 4
        %s517 = scalar_lea.vmem %s2, %s516
        %p518 = pneg %p112
        %p519 = pneg %p109
        %s520 = sand.u32 %s27, 1
        %s521 = scalar_lea.sflag [#allocation5], %s520
        %s522 = sand.u32 %s125, 1
        %s523 = smul.addr %s522, 4
        %s524 = scalar_lea.vmem [#allocation9], %s523
        %p525 = pneg %p138
        %p526 = pneg %p135
        %p527 = scmp.lt.s32.totalorder %s32, 1
        %s528 = scalar_select %p527, %s32, 1
        %s529 = smul.addr %s528, 32
        %s530 = smul.addr %s529, 8
        %s531 = scalar_lea.vmem %s4, %s530
        %p532 = pneg %p164
        %p533 = pneg %p161
        %s534 = sand.u32 %s27, 1
        %s535 = scalar_lea.sflag [#allocation5], %s534
        %s536 = sand.u32 %s177, 1
        %s537 = smul.addr %s536, 4
        %s538 = scalar_lea.vmem [#allocation10], %s537
        %p539 = pneg %p190
        %p540 = pneg %p187
        %p541 = scmp.lt.s32.totalorder %s32, 1
        %s542 = scalar_select %p541, %s32, 1
        %s543 = smul.addr %s542, 16
        %s544 = smul.addr %s543, 8
        %s545 = scalar_lea.vmem %s6, %s544
        %p546 = pneg %p216
        %p547 = pneg %p213
        %p548 = scmp.lt.s32.totalorder %s32, 1
        %s549 = scalar_select %p548, %s32, 1
        %s550 = smul.addr %s549, 2
        %s551 = scalar_lea.vmem %s7, %s550
        %p552 = pneg %p242
        %p553 = pneg %p239
        %p554 = scmp.lt.s32.totalorder %s32, 1
        %s555 = scalar_select %p554, %s32, 1
        %s556 = smul.addr %s555, 32
        %s557 = smul.addr %s556, 8
        %s558 = scalar_lea.vmem %s8, %s557
        %p559 = pneg %p268
        %p560 = pneg %p265
        %p561 = scmp.lt.s32.totalorder %s32, 1
        %s562 = scalar_select %p561, %s32, 1
        %s563 = scalar_lea.vmem %s9, %s562
        %p564 = pneg %p294
        %p565 = pneg %p291
        %p566 = pneg %p315
        %p567 = pneg %p312
        %p568 = pneg %p343
        %p569 = pneg %p340
        %s570 = sand.u32 %s330, 1
        %s571 = scalar_lea.sflag [#allocation6], %s570
        %s572 = sand.u32 %s330, 1
        %s573 = smul.addr %s572, 16
        %s574 = scalar_lea.vmem [#allocation11], %s573
        %s575 = smul.u32 2, %s31
        %s576 = smul.u32 2, %s31
        %p577 = scmp.lt.s32.totalorder %s32, 1
        %s578 = scalar_select %p577, %s32, 1
        %s579 = smul.addr %s578, 4
        %s580 = scalar_lea.vmem %s2, %s579
        %p581 = scmp.lt.s32.totalorder %s32, 1
        %s582 = scalar_select %p581, %s32, 1
        %s583 = smul.addr %s582, 32
        %s584 = smul.addr %s583, 8
        %s585 = scalar_lea.vmem %s4, %s584
        %p586 = scmp.lt.s32.totalorder %s32, 1
        %s587 = scalar_select %p586, %s32, 1
        %s588 = smul.addr %s587, 16
        %s589 = smul.addr %s588, 8
        %s590 = scalar_lea.vmem %s6, %s589
        %p591 = scmp.lt.s32.totalorder %s32, 1
        %s592 = scalar_select %p591, %s32, 1
        %s593 = smul.addr %s592, 2
        %s594 = scalar_lea.vmem %s7, %s593
        %p595 = scmp.lt.s32.totalorder %s32, 1
        %s596 = scalar_select %p595, %s32, 1
        %s597 = smul.addr %s596, 32
        %s598 = smul.addr %s597, 8
        %s599 = scalar_lea.vmem %s8, %s598
        %p600 = scmp.lt.s32.totalorder %s32, 1
        %s601 = scalar_select %p600, %s32, 1
        %s602 = scalar_lea.vmem %s9, %s601
        %s603 = smul.u32 2, %s31
        %p604 = scmp.eq.s32.totalorder %s32, 0
        // Predicated region
        $region81: #{tpu_custom_call.1} parent=63 // pred_check
          %p605 = pneg %p604
        $region82: #{tpu_custom_call.1} parent=63 // pred_check_branch
          %607 = sbr.rel (%p605) target = $region84
        $region83: #{tpu_custom_call.1} parent=63 // pred_region
          %v608 = vld [vmem:[#allocation4] sm:$0xff]
          %v609 = vld [vmem:[#allocation4 + $0x8] sm:$0xff]
          %vm610 = vcmask 523264
          %611 = vst.msk [vmem:[#allocation2] sm:$0xff] %vm610, %v608
          %612 = vst.msk [vmem:[#allocation2 + $0x8] sm:$0xff] %vm610, %v609
        $region84: #{tpu_custom_call.1} parent=63 // pred_fallthru
          _
        %v613 = vld [vmem:[#allocation2] sm:$0xff]
        %v614 = vld [vmem:[#allocation2 + $0x8] sm:$0xff]
        %v615 = vld [vmem:[%s580] sm:$0xf]
        %v616 = vld [vmem:[%s496] sm:$0xf]
        %v617 = vld [vmem:[%s585] sm:$0xff]
        %v618 = vld [vmem:[%s585 + $0x8] sm:$0xff]
        %v619 = vld [vmem:[%s585 + $0x10] sm:$0xff]
        %v620 = vld [vmem:[%s585 + $0x18] sm:$0xff]
        %v621 = vld [vmem:[%s585 + $0x20] sm:$0xff]
        %v622 = vld [vmem:[%s585 + $0x28] sm:$0xff]
        %v623 = vld [vmem:[%s585 + $0x30] sm:$0xff]
        %v624 = vld [vmem:[%s585 + $0x38] sm:$0xff]
        %v625 = vld [vmem:[%s585 + $0x40] sm:$0xff]
        %v626 = vld [vmem:[%s585 + $0x48] sm:$0xff]
        %v627 = vld [vmem:[%s585 + $0x50] sm:$0xff]
        %v628 = vld [vmem:[%s585 + $0x58] sm:$0xff]
        %v629 = vld [vmem:[%s585 + $0x60] sm:$0xff]
        %v630 = vld [vmem:[%s585 + $0x68] sm:$0xff]
        %v631 = vld [vmem:[%s585 + $0x70] sm:$0xff]
        %v632 = vld [vmem:[%s585 + $0x78] sm:$0xff]
        %v633 = vld [vmem:[%s585 + $0x80] sm:$0xff]
        %v634 = vld [vmem:[%s585 + $0x88] sm:$0xff]
        %v635 = vld [vmem:[%s585 + $0x90] sm:$0xff]
        %v636 = vld [vmem:[%s585 + $0x98] sm:$0xff]
        %v637 = vld [vmem:[%s585 + $0xa0] sm:$0xff]
        %v638 = vld [vmem:[%s585 + $0xa8] sm:$0xff]
        %v639 = vld [vmem:[%s585 + $0xb0] sm:$0xff]
        %v640 = vld [vmem:[%s585 + $0xb8] sm:$0xff]
        %v641 = vld [vmem:[%s585 + $0xc0] sm:$0xff]
        %v642 = vld [vmem:[%s585 + $0xc8] sm:$0xff]
        %v643 = vld [vmem:[%s585 + $0xd0] sm:$0xff]
        %v644 = vld [vmem:[%s585 + $0xd8] sm:$0xff]
        %v645 = vld [vmem:[%s585 + $0xe0] sm:$0xff]
        %v646 = vld [vmem:[%s585 + $0xe8] sm:$0xff]
        %v647 = vld [vmem:[%s585 + $0xf0] sm:$0xff]
        %v648 = vld [vmem:[%s585 + $0xf8] sm:$0xff]
        %v649 = vld [vmem:[%s505] sm:$0xf]
        %vm650 = vcmask 523264
        %v651 = vsel %vm650, %v613, 0.0
        %652 = vadd.xlane.f32.xlu0 %v651
        %v653 = vpop.xlane.xlu0 %652
        %v654 = vsel %vm650, %v614, 0.0
        %655 = vadd.xlane.f32.xlu0 %v654
        %v656 = vpop.xlane.xlu0 %655
        %v657 = vrcp.pop 64.0
        %v658 = vmul.f32 %v653, %v657
        %v659 = vmul.f32 %v656, %v657
        %v660 = vsub.f32 %v613, %v658
        %v661 = vsub.f32 %v614, %v659
        %v662 = vmul.f32 %v660, %v660
        %v663 = vmul.f32 %v661, %v661
        %v664 = vsel %vm650, %v662, 0.0
        %665 = vadd.xlane.f32.xlu0 %v664
        %v666 = vpop.xlane.xlu0 %665
        %v667 = vsel %vm650, %v663, 0.0
        %668 = vadd.xlane.f32.xlu0 %v667
        %v669 = vpop.xlane.xlu0 %668
        %v670 = vmul.f32 %v666, %v657
        %v671 = vmul.f32 %v669, %v657
        %v672 = vadd.f32 %v670, 1e-12
        %v673 = vadd.f32 %v671, 1e-12
        %v674 = vrsqrt.pop %v672
        %v675 = vrsqrt.pop %v673
        %v676 = vmul.f32 %v660, %v674
        %v677 = vmul.f32 %v661, %v675
        %v678 = vlaneseq
        %v679 = vshrl.u32 %v678, 7
        %v680 = vsub.s32 0, %v679
        %v681 = vrot.slane %v615, %v680
        %v682 = vmul.f32 %v676, %v681
        %v683 = vmul.f32 %v677, %v681
        %v684 = vlaneseq
        %v685 = vshrl.u32 %v684, 7
        %v686 = vsub.s32 0, %v685
        %v687 = vrot.slane %v616, %v686
        %v688 = vadd.f32 %v682, %v687
        %v689 = vadd.f32 %v683, %v687
        %v690 = vlaneseq
        %v691 = vshrl.u32 %v690, 7
        %v692 = vsub.s32 0, %v691
        %v693 = vrot.slane %v649, %v692
        %v695 = vsel %vm650, %v688, 0
        %v698 = vsel %vm650, %v689, 0
        %700 = vmatprep.subr.mxu0 0.0
        %701 = vmatpush1.msra.mxu0 %v617
        %702 = vmatprep.subr.mxu0 0.0
        %703 = vmatpush1.msra.mxu0 %v618
        %704 = vmatprep.subr.mxu0 0.0
        %705 = vmatpush1.msra.mxu0 %v619
        %706 = vmatprep.subr.mxu0 0.0
        %707 = vmatpush1.msra.mxu0 %v620
        %708 = vmatprep.subr.mxu0 0.0
        %709 = vmatpush1.msra.mxu0 %v621
        %710 = vmatprep.subr.mxu0 0.0
        %711 = vmatpush1.msra.mxu0 %v622
        %712 = vmatprep.subr.mxu0 0.0
        %713 = vmatpush1.msra.mxu0 %v623
        %714 = vmatprep.subr.mxu0 0.0
        %715 = vmatpush1.msra.mxu0 %v624
        %716 = vmatprep.subr.mxu0 0.0
        %717 = vmatpush1.msra.mxu0 0.0
        %718 = vmatprep.subr.mxu0 0.0
        %719 = vmatpush1.msra.mxu0 0.0
        %720 = vmatprep.subr.mxu0 0.0
        %721 = vmatpush1.msra.mxu0 0.0
        %722 = vmatprep.subr.mxu0 0.0
        %723 = vmatpush1.msra.mxu0 0.0
        %724 = vmatprep.subr.mxu0 0.0
        %725 = vmatpush1.msra.mxu0 0.0
        %726 = vmatprep.subr.mxu0 0.0
        %727 = vmatpush1.msra.mxu0 0.0
        %728 = vmatprep.subr.mxu0 0.0
        %729 = vmatpush1.msra.mxu0 0.0
        %730 = vmatprep.subr.mxu0 0.0
        %731 = vmatpush1.msra.mxu0 0.0
        %732 = vmatprep.subr.mxu0 0.0
        %733 = vmatpush1.msra.mxu0 0.0
        %734 = vmatprep.subr.mxu0 0.0
        %735 = vmatpush1.msra.mxu0 0.0
        %736 = vmatprep.subr.mxu0 0.0
        %737 = vmatpush1.msra.mxu0 0.0
        %738 = vmatprep.subr.mxu0 0.0
        %739 = vmatpush1.msra.mxu0 0.0
        %740 = vmatprep.subr.mxu0 0.0
        %741 = vmatpush1.msra.mxu0 0.0
        %742 = vmatprep.subr.mxu0 0.0
        %743 = vmatpush1.msra.mxu0 0.0
        %744 = vmatprep.subr.mxu0 0.0
        %745 = vmatpush1.msra.mxu0 0.0
        %746 = vmatprep.subr.mxu0 0.0
        %747 = vmatpush1.msra.mxu0 0.0
        %748 = vmatprep.subr.mxu0 0.0
        %749 = vmatpush1.msra.mxu0 0.0
        %750 = vmatprep.subr.mxu0 0.0
        %751 = vmatpush1.msra.mxu0 0.0
        %752 = vmatprep.subr.mxu0 0.0
        %753 = vmatpush1.msra.mxu0 0.0
        %754 = vmatprep.subr.mxu0 0.0
        %755 = vmatpush1.msra.mxu0 0.0
        %756 = vmatprep.subr.mxu0 0.0
        %757 = vmatpush1.msra.mxu0 0.0
        %758 = vmatprep.subr.mxu0 0.0
        %759 = vmatpush1.msra.mxu0 0.0
        %760 = vmatprep.subr.mxu0 0.0
        %761 = vmatpush1.msra.mxu0 0.0
        %762 = vmatprep.subr.mxu0 0.0
        %763 = vmatpush1.msra.mxu0 0.0
        %764 = vmatprep.mubr.f32.mxu0 0.0
        %765 = vmatmul.mubr.f32.gmra.mrb[0].mxu0 %v695
        %v766 = vpop.f32.mrb[0].mxu0
        %v767 = vadd.f32 %v693, %v766
        %v768 = vpop.f32.mrb[0].mxu0
        %769 = vmatprep.mubr.f32.mxu0 0.0
        %770 = vmatmul.mubr.f32.gmra.mrb[0].mxu0 %v698
        %v771 = vpop.f32.mrb[0].mxu0
        %v772 = vadd.f32 %v693, %v771
        %v773 = vpop.f32.mrb[0].mxu0
        %774 = vdwg.mxu0
        %v775 = vmul.f32 %v767, 0.17677669
        %v776 = vmul.f32 %v772, 0.17677669
        %v777 = vlaneseq
        %v778 = vshrl.u32 %v777, 7
        %v779 = vsub.s32 1, %v778
        %v780 = vrot.slane %v649, %v779
        %781 = vmatprep.subr.mxu0 0.0
        %782 = vmatpush1.msra.mxu0 %v625
        %783 = vmatprep.subr.mxu0 0.0
        %784 = vmatpush1.msra.mxu0 %v626
        %785 = vmatprep.subr.mxu0 0.0
        %786 = vmatpush1.msra.mxu0 %v627
        %787 = vmatprep.subr.mxu0 0.0
        %788 = vmatpush1.msra.mxu0 %v628
        %789 = vmatprep.subr.mxu0 0.0
        %790 = vmatpush1.msra.mxu0 %v629
        %791 = vmatprep.subr.mxu0 0.0
        %792 = vmatpush1.msra.mxu0 %v630
        %793 = vmatprep.subr.mxu0 0.0
        %794 = vmatpush1.msra.mxu0 %v631
        %795 = vmatprep.subr.mxu0 0.0
        %796 = vmatpush1.msra.mxu0 %v632
        %797 = vmatprep.subr.mxu0 0.0
        %798 = vmatpush1.msra.mxu0 0.0
        %799 = vmatprep.subr.mxu0 0.0
        %800 = vmatpush1.msra.mxu0 0.0
        %801 = vmatprep.subr.mxu0 0.0
        %802 = vmatpush1.msra.mxu0 0.0
        %803 = vmatprep.subr.mxu0 0.0
        %804 = vmatpush1.msra.mxu0 0.0
        %805 = vmatprep.subr.mxu0 0.0
        %806 = vmatpush1.msra.mxu0 0.0
        %807 = vmatprep.subr.mxu0 0.0
        %808 = vmatpush1.msra.mxu0 0.0
        %809 = vmatprep.subr.mxu0 0.0
        %810 = vmatpush1.msra.mxu0 0.0
        %811 = vmatprep.subr.mxu0 0.0
        %812 = vmatpush1.msra.mxu0 0.0
        %813 = vmatprep.subr.mxu0 0.0
        %814 = vmatpush1.msra.mxu0 0.0
        %815 = vmatprep.subr.mxu0 0.0
        %816 = vmatpush1.msra.mxu0 0.0
        %817 = vmatprep.subr.mxu0 0.0
        %818 = vmatpush1.msra.mxu0 0.0
        %819 = vmatprep.subr.mxu0 0.0
        %820 = vmatpush1.msra.mxu0 0.0
        %821 = vmatprep.subr.mxu0 0.0
        %822 = vmatpush1.msra.mxu0 0.0
        %823 = vmatprep.subr.mxu0 0.0
        %824 = vmatpush1.msra.mxu0 0.0
        %825 = vmatprep.subr.mxu0 0.0
        %826 = vmatpush1.msra.mxu0 0.0
        %827 = vmatprep.subr.mxu0 0.0
        %828 = vmatpush1.msra.mxu0 0.0
        %829 = vmatprep.subr.mxu0 0.0
        %830 = vmatpush1.msra.mxu0 0.0
        %831 = vmatprep.subr.mxu0 0.0
        %832 = vmatpush1.msra.mxu0 0.0
        %833 = vmatprep.subr.mxu0 0.0
        %834 = vmatpush1.msra.mxu0 0.0
        %835 = vmatprep.subr.mxu0 0.0
        %836 = vmatpush1.msra.mxu0 0.0
        %837 = vmatprep.subr.mxu0 0.0
        %838 = vmatpush1.msra.mxu0 0.0
        %839 = vmatprep.subr.mxu0 0.0
        %840 = vmatpush1.msra.mxu0 0.0
        %841 = vmatprep.subr.mxu0 0.0
        %842 = vmatpush1.msra.mxu0 0.0
        %843 = vmatprep.subr.mxu0 0.0
        %844 = vmatpush1.msra.mxu0 0.0
        %845 = vmatprep.mubr.f32.mxu0 0.0
        %846 = vmatmul.mubr.f32.gmra.mrb[0].mxu0 %v695
        %v847 = vpop.f32.mrb[0].mxu0
        %v848 = vadd.f32 %v780, %v847
        %v849 = vpop.f32.mrb[0].mxu0
        %850 = vmatprep.mubr.f32.mxu0 0.0
        %851 = vmatmul.mubr.f32.gmra.mrb[0].mxu0 %v698
        %v852 = vpop.f32.mrb[0].mxu0
        %v853 = vadd.f32 %v780, %v852
        %v854 = vpop.f32.mrb[0].mxu0
        %855 = vdwg.mxu0
        %v856 = vlaneseq
        %v857 = vshrl.u32 %v856, 7
        %v858 = vsub.s32 2, %v857
        %v859 = vrot.slane %v649, %v858
        %860 = vmatprep.subr.mxu0 0.0
        %861 = vmatpush1.msra.mxu0 %v633
        %862 = vmatprep.subr.mxu0 0.0
        %863 = vmatpush1.msra.mxu0 %v634
        %864 = vmatprep.subr.mxu0 0.0
        %865 = vmatpush1.msra.mxu0 %v635
        %866 = vmatprep.subr.mxu0 0.0
        %867 = vmatpush1.msra.mxu0 %v636
        %868 = vmatprep.subr.mxu0 0.0
        %869 = vmatpush1.msra.mxu0 %v637
        %870 = vmatprep.subr.mxu0 0.0
        %871 = vmatpush1.msra.mxu0 %v638
        %872 = vmatprep.subr.mxu0 0.0
        %873 = vmatpush1.msra.mxu0 %v639
        %874 = vmatprep.subr.mxu0 0.0
        %875 = vmatpush1.msra.mxu0 %v640
        %876 = vmatprep.subr.mxu0 0.0
        %877 = vmatpush1.msra.mxu0 0.0
        %878 = vmatprep.subr.mxu0 0.0
        %879 = vmatpush1.msra.mxu0 0.0
        %880 = vmatprep.subr.mxu0 0.0
        %881 = vmatpush1.msra.mxu0 0.0
        %882 = vmatprep.subr.mxu0 0.0
        %883 = vmatpush1.msra.mxu0 0.0
        %884 = vmatprep.subr.mxu0 0.0
        %885 = vmatpush1.msra.mxu0 0.0
        %886 = vmatprep.subr.mxu0 0.0
        %887 = vmatpush1.msra.mxu0 0.0
        %888 = vmatprep.subr.mxu0 0.0
        %889 = vmatpush1.msra.mxu0 0.0
        %890 = vmatprep.subr.mxu0 0.0
        %891 = vmatpush1.msra.mxu0 0.0
        %892 = vmatprep.subr.mxu0 0.0
        %893 = vmatpush1.msra.mxu0 0.0
        %894 = vmatprep.subr.mxu0 0.0
        %895 = vmatpush1.msra.mxu0 0.0
        %896 = vmatprep.subr.mxu0 0.0
        %897 = vmatpush1.msra.mxu0 0.0
        %898 = vmatprep.subr.mxu0 0.0
        %899 = vmatpush1.msra.mxu0 0.0
        %900 = vmatprep.subr.mxu0 0.0
        %901 = vmatpush1.msra.mxu0 0.0
        %902 = vmatprep.subr.mxu0 0.0
        %903 = vmatpush1.msra.mxu0 0.0
        %904 = vmatprep.subr.mxu0 0.0
        %905 = vmatpush1.msra.mxu0 0.0
        %906 = vmatprep.subr.mxu0 0.0
        %907 = vmatpush1.msra.mxu0 0.0
        %908 = vmatprep.subr.mxu0 0.0
        %909 = vmatpush1.msra.mxu0 0.0
        %910 = vmatprep.subr.mxu0 0.0
        %911 = vmatpush1.msra.mxu0 0.0
        %912 = vmatprep.subr.mxu0 0.0
        %913 = vmatpush1.msra.mxu0 0.0
        %914 = vmatprep.subr.mxu0 0.0
        %915 = vmatpush1.msra.mxu0 0.0
        %916 = vmatprep.subr.mxu0 0.0
        %917 = vmatpush1.msra.mxu0 0.0
        %918 = vmatprep.subr.mxu0 0.0
        %919 = vmatpush1.msra.mxu0 0.0
        %920 = vmatprep.subr.mxu0 0.0
        %921 = vmatpush1.msra.mxu0 0.0
        %922 = vmatprep.subr.mxu0 0.0
        %923 = vmatpush1.msra.mxu0 0.0
        %924 = vmatprep.mubr.f32.mxu0 0.0
        %925 = vmatmul.mubr.f32.gmra.mrb[0].mxu0 %v695
        %v926 = vpop.f32.mrb[0].mxu0
        %v927 = vadd.f32 %v859, %v926
        %v928 = vpop.f32.mrb[0].mxu0
        %929 = vmatprep.mubr.f32.mxu0 0.0
        %930 = vmatmul.mubr.f32.gmra.mrb[0].mxu0 %v698
        %v931 = vpop.f32.mrb[0].mxu0
        %v932 = vadd.f32 %v859, %v931
        %v933 = vpop.f32.mrb[0].mxu0
        %934 = vdwg.mxu0
        %v935 = vld [vmem:[#allocation7] sm:$0xff]
        %vm936 = vcmask 261120
        %v938 = vsel %vm936, %v775, 0
        %v941 = vsel %vm936, %v848, 0
        %943 = vmatprep.subr.mxu0 0.0
        %944 = vmatpush1.xpose.msra.mxu0 %v941
        %945 = vmatprep.subr.mxu0 0.0
        %946 = vmatpush1.xpose.msra.mxu0 0.0
        %947 = vmatprep.subr.mxu0 0.0
        %948 = vmatpush1.xpose.msra.mxu0 0.0
        %949 = vmatprep.subr.mxu0 0.0
        %950 = vmatpush1.xpose.msra.mxu0 0.0
        %951 = vmatprep.subr.mxu0 0.0
        %952 = vmatpush1.xpose.msra.mxu0 0.0
        %953 = vmatprep.subr.mxu0 0.0
        %954 = vmatpush1.xpose.msra.mxu0 0.0
        %955 = vmatprep.subr.mxu0 0.0
        %956 = vmatpush1.xpose.msra.mxu0 0.0
        %957 = vmatprep.subr.mxu0 0.0
        %958 = vmatpush1.xpose.msra.mxu0 0.0
        %959 = vmatprep.subr.mxu0 0.0
        %960 = vmatpush1.xpose.msra.mxu0 0.0
        %961 = vmatprep.subr.mxu0 0.0
        %962 = vmatpush1.xpose.msra.mxu0 0.0
        %963 = vmatprep.subr.mxu0 0.0
        %964 = vmatpush1.xpose.msra.mxu0 0.0
        %965 = vmatprep.subr.mxu0 0.0
        %966 = vmatpush1.xpose.msra.mxu0 0.0
        %967 = vmatprep.subr.mxu0 0.0
        %968 = vmatpush1.xpose.msra.mxu0 0.0
        %969 = vmatprep.subr.mxu0 0.0
        %970 = vmatpush1.xpose.msra.mxu0 0.0
        %971 = vmatprep.subr.mxu0 0.0
        %972 = vmatpush1.xpose.msra.mxu0 0.0
        %973 = vmatprep.subr.mxu0 0.0
        %974 = vmatpush1.xpose.msra.mxu0 0.0
        %975 = vmatprep.subr.mxu0 0.0
        %976 = vmatpush1.xpose.msra.mxu0 0.0
        %977 = vmatprep.subr.mxu0 0.0
        %978 = vmatpush1.xpose.msra.mxu0 0.0
        %979 = vmatprep.subr.mxu0 0.0
        %980 = vmatpush1.xpose.msra.mxu0 0.0
        %981 = vmatprep.subr.mxu0 0.0
        %982 = vmatpush1.xpose.msra.mxu0 0.0
        %983 = vmatprep.subr.mxu0 0.0
        %984 = vmatpush1.xpose.msra.mxu0 0.0
        %985 = vmatprep.subr.mxu0 0.0
        %986 = vmatpush1.xpose.msra.mxu0 0.0
        %987 = vmatprep.subr.mxu0 0.0
        %988 = vmatpush1.xpose.msra.mxu0 0.0
        %989 = vmatprep.subr.mxu0 0.0
        %990 = vmatpush1.xpose.msra.mxu0 0.0
        %991 = vmatprep.subr.mxu0 0.0
        %992 = vmatpush1.xpose.msra.mxu0 0.0
        %993 = vmatprep.subr.mxu0 0.0
        %994 = vmatpush1.xpose.msra.mxu0 0.0
        %995 = vmatprep.subr.mxu0 0.0
        %996 = vmatpush1.xpose.msra.mxu0 0.0
        %997 = vmatprep.subr.mxu0 0.0
        %998 = vmatpush1.xpose.msra.mxu0 0.0
        %999 = vmatprep.subr.mxu0 0.0
        %1000 = vmatpush1.xpose.msra.mxu0 0.0
        %1001 = vmatprep.subr.mxu0 0.0
        %1002 = vmatpush1.xpose.msra.mxu0 0.0
        %1003 = vmatprep.subr.mxu0 0.0
        %1004 = vmatpush1.xpose.msra.mxu0 0.0
        %1005 = vmatprep.subr.mxu0 0.0
        %1006 = vmatpush1.xpose.msra.mxu0 0.0
        %1007 = vmatprep.mubr.f32.mxu0 0.0
        %1008 = vmatmul.mubr.f32.gmra.mrb[0].mxu0 %v938
        %v1009 = vpop.f32.mrb[0].mxu0
        %v1010 = vadd.f32 %v935, %v1009
        %v1011 = vpop.f32.mrb[0].mxu0
        %1012 = vdwg.mxu0
        %vm1013 = vcmask 64512
        %v1014 = vsel %vm1013, %v1010, -inf
        %1015 = vmax.xlane.f32.xlu0 %v1014
        %v1016 = vpop.xlane.xlu0 %1015
        %v1017 = vsub.f32 %v1010, %v1016
        %v1018 = vmul.f32 %v1017, 1.442695
        %v1019 = vpow.pop %v1018
        %v1020 = vsel %vm1013, %v1019, 0.0
        %1021 = vadd.xlane.f32.xlu0 %v1020
        %v1022 = vpop.xlane.xlu0 %1021
        %v1023 = vrcp.pop %v1022
        %v1024 = vmul.f32 %v1019, %v1023
        %v1026 = vsel %vm1013, %v1024, 0
        %1028 = vmatprep.subr.mxu0 0.0
        %1029 = vmatpush1.msra.mxu0 %v927
        %1030 = vmatprep.subr.mxu0 0.0
        %1031 = vmatpush1.msra.mxu0 0.0
        %1032 = vmatprep.subr.mxu0 0.0
        %1033 = vmatpush1.msra.mxu0 0.0
        %1034 = vmatprep.subr.mxu0 0.0
        %1035 = vmatpush1.msra.mxu0 0.0
        %1036 = vmatprep.subr.mxu0 0.0
        %1037 = vmatpush1.msra.mxu0 0.0
        %1038 = vmatprep.subr.mxu0 0.0
        %1039 = vmatpush1.msra.mxu0 0.0
        %1040 = vmatprep.subr.mxu0 0.0
        %1041 = vmatpush1.msra.mxu0 0.0
        %1042 = vmatprep.subr.mxu0 0.0
        %1043 = vmatpush1.msra.mxu0 0.0
        %1044 = vmatprep.subr.mxu0 0.0
        %1045 = vmatpush1.msra.mxu0 0.0
        %1046 = vmatprep.subr.mxu0 0.0
        %1047 = vmatpush1.msra.mxu0 0.0
        %1048 = vmatprep.subr.mxu0 0.0
        %1049 = vmatpush1.msra.mxu0 0.0
        %1050 = vmatprep.subr.mxu0 0.0
        %1051 = vmatpush1.msra.mxu0 0.0
        %1052 = vmatprep.subr.mxu0 0.0
        %1053 = vmatpush1.msra.mxu0 0.0
        %1054 = vmatprep.subr.mxu0 0.0
        %1055 = vmatpush1.msra.mxu0 0.0
        %1056 = vmatprep.subr.mxu0 0.0
        %1057 = vmatpush1.msra.mxu0 0.0
        %1058 = vmatprep.subr.mxu0 0.0
        %1059 = vmatpush1.msra.mxu0 0.0
        %1060 = vmatprep.subr.mxu0 0.0
        %1061 = vmatpush1.msra.mxu0 0.0
        %1062 = vmatprep.subr.mxu0 0.0
        %1063 = vmatpush1.msra.mxu0 0.0
        %1064 = vmatprep.subr.mxu0 0.0
        %1065 = vmatpush1.msra.mxu0 0.0
        %1066 = vmatprep.subr.mxu0 0.0
        %1067 = vmatpush1.msra.mxu0 0.0
        %1068 = vmatprep.subr.mxu0 0.0
        %1069 = vmatpush1.msra.mxu0 0.0
        %1070 = vmatprep.subr.mxu0 0.0
        %1071 = vmatpush1.msra.mxu0 0.0
        %1072 = vmatprep.subr.mxu0 0.0
        %1073 = vmatpush1.msra.mxu0 0.0
        %1074 = vmatprep.subr.mxu0 0.0
        %1075 = vmatpush1.msra.mxu0 0.0
        %1076 = vmatprep.subr.mxu0 0.0
        %1077 = vmatpush1.msra.mxu0 0.0
        %1078 = vmatprep.subr.mxu0 0.0
        %1079 = vmatpush1.msra.mxu0 0.0
        %1080 = vmatprep.subr.mxu0 0.0
        %1081 = vmatpush1.msra.mxu0 0.0
        %1082 = vmatprep.subr.mxu0 0.0
        %1083 = vmatpush1.msra.mxu0 0.0
        %1084 = vmatprep.subr.mxu0 0.0
        %1085 = vmatpush1.msra.mxu0 0.0
        %1086 = vmatprep.subr.mxu0 0.0
        %1087 = vmatpush1.msra.mxu0 0.0
        %1088 = vmatprep.subr.mxu0 0.0
        %1089 = vmatpush1.msra.mxu0 0.0
        %1090 = vmatprep.subr.mxu0 0.0
        %1091 = vmatpush1.msra.mxu0 0.0
        %1092 = vmatprep.mubr.f32.mxu0 0.0
        %1093 = vmatmul.mubr.f32.gmra.mrb[0].mxu0 %v1026
        %v1094 = vpop.f32.mrb[0].mxu0
        %v1095 = vadd.f32 0.0, %v1094
        %v1096 = vpop.f32.mrb[0].mxu0
        %1097 = vdwg.mxu0
        %1098 = vst.msk [vmem:[#allocation3] sm:$0xff] %vm936, %v1095
        %1099 = vrot.lane.b32.xlu0 %v775, 96
        %v1100 = vpop.permute.xlu0 %1099
        %1101 = vrot.lane.b32.xlu0 %v848, 96
        %v1102 = vpop.permute.xlu0 %1101
        %v1103 = vsel %vm936, %v1100, 0
        %v1105 = vsel %vm936, %v1102, 0
        %1107 = vmatprep.subr.mxu0 0.0
        %1108 = vmatpush1.xpose.msra.mxu0 %v1105
        %1109 = vmatprep.subr.mxu0 0.0
        %1110 = vmatpush1.xpose.msra.mxu0 0.0
        %1111 = vmatprep.subr.mxu0 0.0
        %1112 = vmatpush1.xpose.msra.mxu0 0.0
        %1113 = vmatprep.subr.mxu0 0.0
        %1114 = vmatpush1.xpose.msra.mxu0 0.0
        %1115 = vmatprep.subr.mxu0 0.0
        %1116 = vmatpush1.xpose.msra.mxu0 0.0
        %1117 = vmatprep.subr.mxu0 0.0
        %1118 = vmatpush1.xpose.msra.mxu0 0.0
        %1119 = vmatprep.subr.mxu0 0.0
        %1120 = vmatpush1.xpose.msra.mxu0 0.0
        %1121 = vmatprep.subr.mxu0 0.0
        %1122 = vmatpush1.xpose.msra.mxu0 0.0
        %1123 = vmatprep.subr.mxu0 0.0
        %1124 = vmatpush1.xpose.msra.mxu0 0.0
        %1125 = vmatprep.subr.mxu0 0.0
        %1126 = vmatpush1.xpose.msra.mxu0 0.0
        %1127 = vmatprep.subr.mxu0 0.0
        %1128 = vmatpush1.xpose.msra.mxu0 0.0
        %1129 = vmatprep.subr.mxu0 0.0
        %1130 = vmatpush1.xpose.msra.mxu0 0.0
        %1131 = vmatprep.subr.mxu0 0.0
        %1132 = vmatpush1.xpose.msra.mxu0 0.0
        %1133 = vmatprep.subr.mxu0 0.0
        %1134 = vmatpush1.xpose.msra.mxu0 0.0
        %1135 = vmatprep.subr.mxu0 0.0
        %1136 = vmatpush1.xpose.msra.mxu0 0.0
        %1137 = vmatprep.subr.mxu0 0.0
        %1138 = vmatpush1.xpose.msra.mxu0 0.0
        %1139 = vmatprep.subr.mxu0 0.0
        %1140 = vmatpush1.xpose.msra.mxu0 0.0
        %1141 = vmatprep.subr.mxu0 0.0
        %1142 = vmatpush1.xpose.msra.mxu0 0.0
        %1143 = vmatprep.subr.mxu0 0.0
        %1144 = vmatpush1.xpose.msra.mxu0 0.0
        %1145 = vmatprep.subr.mxu0 0.0
        %1146 = vmatpush1.xpose.msra.mxu0 0.0
        %1147 = vmatprep.subr.mxu0 0.0
        %1148 = vmatpush1.xpose.msra.mxu0 0.0
        %1149 = vmatprep.subr.mxu0 0.0
        %1150 = vmatpush1.xpose.msra.mxu0 0.0
        %1151 = vmatprep.subr.mxu0 0.0
        %1152 = vmatpush1.xpose.msra.mxu0 0.0
        %1153 = vmatprep.subr.mxu0 0.0
        %1154 = vmatpush1.xpose.msra.mxu0 0.0
        %1155 = vmatprep.subr.mxu0 0.0
        %1156 = vmatpush1.xpose.msra.mxu0 0.0
        %1157 = vmatprep.subr.mxu0 0.0
        %1158 = vmatpush1.xpose.msra.mxu0 0.0
        %1159 = vmatprep.subr.mxu0 0.0
        %1160 = vmatpush1.xpose.msra.mxu0 0.0
        %1161 = vmatprep.subr.mxu0 0.0
        %1162 = vmatpush1.xpose.msra.mxu0 0.0
        %1163 = vmatprep.subr.mxu0 0.0
        %1164 = vmatpush1.xpose.msra.mxu0 0.0
        %1165 = vmatprep.subr.mxu0 0.0
        %1166 = vmatpush1.xpose.msra.mxu0 0.0
        %1167 = vmatprep.subr.mxu0 0.0
        %1168 = vmatpush1.xpose.msra.mxu0 0.0
        %1169 = vmatprep.subr.mxu0 0.0
        %1170 = vmatpush1.xpose.msra.mxu0 0.0
        %1171 = vmatprep.mubr.f32.mxu0 0.0
        %1172 = vmatmul.mubr.f32.gmra.mrb[0].mxu0 %v1103
        %v1173 = vpop.f32.mrb[0].mxu0
        %v1174 = vadd.f32 %v935, %v1173
        %v1175 = vpop.f32.mrb[0].mxu0
        %1176 = vdwg.mxu0
        %v1177 = vsel %vm1013, %v1174, -inf
        %1178 = vmax.xlane.f32.xlu0 %v1177
        %v1179 = vpop.xlane.xlu0 %1178
        %v1180 = vsub.f32 %v1174, %v1179
        %v1181 = vmul.f32 %v1180, 1.442695
        %v1182 = vpow.pop %v1181
        %v1183 = vsel %vm1013, %v1182, 0.0
        %1184 = vadd.xlane.f32.xlu0 %v1183
        %v1185 = vpop.xlane.xlu0 %1184
        %v1186 = vrcp.pop %v1185
        %v1187 = vmul.f32 %v1182, %v1186
        %1189 = vrot.lane.b32.xlu0 %v927, 96
        %v1190 = vpop.permute.xlu0 %1189
        %v1193 = vsel %vm1013, %v1187, 0
        %1195 = vmatprep.subr.mxu0 0.0
        %1196 = vmatpush1.msra.mxu0 %v1190
        %1197 = vmatprep.subr.mxu0 0.0
        %1198 = vmatpush1.msra.mxu0 0.0
        %1199 = vmatprep.subr.mxu0 0.0
        %1200 = vmatpush1.msra.mxu0 0.0
        %1201 = vmatprep.subr.mxu0 0.0
        %1202 = vmatpush1.msra.mxu0 0.0
        %1203 = vmatprep.subr.mxu0 0.0
        %1204 = vmatpush1.msra.mxu0 0.0
        %1205 = vmatprep.subr.mxu0 0.0
        %1206 = vmatpush1.msra.mxu0 0.0
        %1207 = vmatprep.subr.mxu0 0.0
        %1208 = vmatpush1.msra.mxu0 0.0
        %1209 = vmatprep.subr.mxu0 0.0
        %1210 = vmatpush1.msra.mxu0 0.0
        %1211 = vmatprep.subr.mxu0 0.0
        %1212 = vmatpush1.msra.mxu0 0.0
        %1213 = vmatprep.subr.mxu0 0.0
        %1214 = vmatpush1.msra.mxu0 0.0
        %1215 = vmatprep.subr.mxu0 0.0
        %1216 = vmatpush1.msra.mxu0 0.0
        %1217 = vmatprep.subr.mxu0 0.0
        %1218 = vmatpush1.msra.mxu0 0.0
        %1219 = vmatprep.subr.mxu0 0.0
        %1220 = vmatpush1.msra.mxu0 0.0
        %1221 = vmatprep.subr.mxu0 0.0
        %1222 = vmatpush1.msra.mxu0 0.0
        %1223 = vmatprep.subr.mxu0 0.0
        %1224 = vmatpush1.msra.mxu0 0.0
        %1225 = vmatprep.subr.mxu0 0.0
        %1226 = vmatpush1.msra.mxu0 0.0
        %1227 = vmatprep.subr.mxu0 0.0
        %1228 = vmatpush1.msra.mxu0 0.0
        %1229 = vmatprep.subr.mxu0 0.0
        %1230 = vmatpush1.msra.mxu0 0.0
        %1231 = vmatprep.subr.mxu0 0.0
        %1232 = vmatpush1.msra.mxu0 0.0
        %1233 = vmatprep.subr.mxu0 0.0
        %1234 = vmatpush1.msra.mxu0 0.0
        %1235 = vmatprep.subr.mxu0 0.0
        %1236 = vmatpush1.msra.mxu0 0.0
        %1237 = vmatprep.subr.mxu0 0.0
        %1238 = vmatpush1.msra.mxu0 0.0
        %1239 = vmatprep.subr.mxu0 0.0
        %1240 = vmatpush1.msra.mxu0 0.0
        %1241 = vmatprep.subr.mxu0 0.0
        %1242 = vmatpush1.msra.mxu0 0.0
        %1243 = vmatprep.subr.mxu0 0.0
        %1244 = vmatpush1.msra.mxu0 0.0
        %1245 = vmatprep.subr.mxu0 0.0
        %1246 = vmatpush1.msra.mxu0 0.0
        %1247 = vmatprep.subr.mxu0 0.0
        %1248 = vmatpush1.msra.mxu0 0.0
        %1249 = vmatprep.subr.mxu0 0.0
        %1250 = vmatpush1.msra.mxu0 0.0
        %1251 = vmatprep.subr.mxu0 0.0
        %1252 = vmatpush1.msra.mxu0 0.0
        %1253 = vmatprep.subr.mxu0 0.0
        %1254 = vmatpush1.msra.mxu0 0.0
        %1255 = vmatprep.subr.mxu0 0.0
        %1256 = vmatpush1.msra.mxu0 0.0
        %1257 = vmatprep.subr.mxu0 0.0
        %1258 = vmatpush1.msra.mxu0 0.0
        %1259 = vmatprep.mubr.f32.mxu0 0.0
        %1260 = vmatmul.mubr.f32.gmra.mrb[0].mxu0 %v1193
        %v1261 = vpop.f32.mrb[0].mxu0
        %v1262 = vadd.f32 0.0, %v1261
        %v1263 = vpop.f32.mrb[0].mxu0
        %1264 = vdwg.mxu0
        %1266 = vrot.lane.b32.xlu0 %v1262, 32
        %v1267 = vpop.permute.xlu0 %1266
        %vm1269 = vcmask 523520
        %1270 = vst.msk [vmem:[#allocation3] sm:$0xff] %vm1269, %v1267
        %s1271 = scalar_lea.vmem [#allocation7], 8
        %v1272 = vld [vmem:[%s1271] sm:$0xff]
        %v1274 = vsel %vm936, %v776, 0
        %v1277 = vsel %vm936, %v853, 0
        %1279 = vmatprep.subr.mxu0 0.0
        %1280 = vmatpush1.xpose.msra.mxu0 %v1277
        %1281 = vmatprep.subr.mxu0 0.0
        %1282 = vmatpush1.xpose.msra.mxu0 0.0
        %1283 = vmatprep.subr.mxu0 0.0
        %1284 = vmatpush1.xpose.msra.mxu0 0.0
        %1285 = vmatprep.subr.mxu0 0.0
        %1286 = vmatpush1.xpose.msra.mxu0 0.0
        %1287 = vmatprep.subr.mxu0 0.0
        %1288 = vmatpush1.xpose.msra.mxu0 0.0
        %1289 = vmatprep.subr.mxu0 0.0
        %1290 = vmatpush1.xpose.msra.mxu0 0.0
        %1291 = vmatprep.subr.mxu0 0.0
        %1292 = vmatpush1.xpose.msra.mxu0 0.0
        %1293 = vmatprep.subr.mxu0 0.0
        %1294 = vmatpush1.xpose.msra.mxu0 0.0
        %1295 = vmatprep.subr.mxu0 0.0
        %1296 = vmatpush1.xpose.msra.mxu0 0.0
        %1297 = vmatprep.subr.mxu0 0.0
        %1298 = vmatpush1.xpose.msra.mxu0 0.0
        %1299 = vmatprep.subr.mxu0 0.0
        %1300 = vmatpush1.xpose.msra.mxu0 0.0
        %1301 = vmatprep.subr.mxu0 0.0
        %1302 = vmatpush1.xpose.msra.mxu0 0.0
        %1303 = vmatprep.subr.mxu0 0.0
        %1304 = vmatpush1.xpose.msra.mxu0 0.0
        %1305 = vmatprep.subr.mxu0 0.0
        %1306 = vmatpush1.xpose.msra.mxu0 0.0
        %1307 = vmatprep.subr.mxu0 0.0
        %1308 = vmatpush1.xpose.msra.mxu0 0.0
        %1309 = vmatprep.subr.mxu0 0.0
        %1310 = vmatpush1.xpose.msra.mxu0 0.0
        %1311 = vmatprep.subr.mxu0 0.0
        %1312 = vmatpush1.xpose.msra.mxu0 0.0
        %1313 = vmatprep.subr.mxu0 0.0
        %1314 = vmatpush1.xpose.msra.mxu0 0.0
        %1315 = vmatprep.subr.mxu0 0.0
        %1316 = vmatpush1.xpose.msra.mxu0 0.0
        %1317 = vmatprep.subr.mxu0 0.0
        %1318 = vmatpush1.xpose.msra.mxu0 0.0
        %1319 = vmatprep.subr.mxu0 0.0
        %1320 = vmatpush1.xpose.msra.mxu0 0.0
        %1321 = vmatprep.subr.mxu0 0.0
        %1322 = vmatpush1.xpose.msra.mxu0 0.0
        %1323 = vmatprep.subr.mxu0 0.0
        %1324 = vmatpush1.xpose.msra.mxu0 0.0
        %1325 = vmatprep.subr.mxu0 0.0
        %1326 = vmatpush1.xpose.msra.mxu0 0.0
        %1327 = vmatprep.subr.mxu0 0.0
        %1328 = vmatpush1.xpose.msra.mxu0 0.0
        %1329 = vmatprep.subr.mxu0 0.0
        %1330 = vmatpush1.xpose.msra.mxu0 0.0
        %1331 = vmatprep.subr.mxu0 0.0
        %1332 = vmatpush1.xpose.msra.mxu0 0.0
        %1333 = vmatprep.subr.mxu0 0.0
        %1334 = vmatpush1.xpose.msra.mxu0 0.0
        %1335 = vmatprep.subr.mxu0 0.0
        %1336 = vmatpush1.xpose.msra.mxu0 0.0
        %1337 = vmatprep.subr.mxu0 0.0
        %1338 = vmatpush1.xpose.msra.mxu0 0.0
        %1339 = vmatprep.subr.mxu0 0.0
        %1340 = vmatpush1.xpose.msra.mxu0 0.0
        %1341 = vmatprep.subr.mxu0 0.0
        %1342 = vmatpush1.xpose.msra.mxu0 0.0
        %1343 = vmatprep.mubr.f32.mxu0 0.0
        %1344 = vmatmul.mubr.f32.gmra.mrb[0].mxu0 %v1274
        %v1345 = vpop.f32.mrb[0].mxu0
        %v1346 = vadd.f32 %v1272, %v1345
        %v1347 = vpop.f32.mrb[0].mxu0
        %1348 = vdwg.mxu0
        %v1349 = vsel %vm1013, %v1346, -inf
        %1350 = vmax.xlane.f32.xlu0 %v1349
        %v1351 = vpop.xlane.xlu0 %1350
        %v1352 = vsub.f32 %v1346, %v1351
        %v1353 = vmul.f32 %v1352, 1.442695
        %v1354 = vpow.pop %v1353
        %v1355 = vsel %vm1013, %v1354, 0.0
        %1356 = vadd.xlane.f32.xlu0 %v1355
        %v1357 = vpop.xlane.xlu0 %1356
        %v1358 = vrcp.pop %v1357
        %v1359 = vmul.f32 %v1354, %v1358
        %v1361 = vsel %vm1013, %v1359, 0
        %1363 = vmatprep.subr.mxu0 0.0
        %1364 = vmatpush1.msra.mxu0 %v932
        %1365 = vmatprep.subr.mxu0 0.0
        %1366 = vmatpush1.msra.mxu0 0.0
        %1367 = vmatprep.subr.mxu0 0.0
        %1368 = vmatpush1.msra.mxu0 0.0
        %1369 = vmatprep.subr.mxu0 0.0
        %1370 = vmatpush1.msra.mxu0 0.0
        %1371 = vmatprep.subr.mxu0 0.0
        %1372 = vmatpush1.msra.mxu0 0.0
        %1373 = vmatprep.subr.mxu0 0.0
        %1374 = vmatpush1.msra.mxu0 0.0
        %1375 = vmatprep.subr.mxu0 0.0
        %1376 = vmatpush1.msra.mxu0 0.0
        %1377 = vmatprep.subr.mxu0 0.0
        %1378 = vmatpush1.msra.mxu0 0.0
        %1379 = vmatprep.subr.mxu0 0.0
        %1380 = vmatpush1.msra.mxu0 0.0
        %1381 = vmatprep.subr.mxu0 0.0
        %1382 = vmatpush1.msra.mxu0 0.0
        %1383 = vmatprep.subr.mxu0 0.0
        %1384 = vmatpush1.msra.mxu0 0.0
        %1385 = vmatprep.subr.mxu0 0.0
        %1386 = vmatpush1.msra.mxu0 0.0
        %1387 = vmatprep.subr.mxu0 0.0
        %1388 = vmatpush1.msra.mxu0 0.0
        %1389 = vmatprep.subr.mxu0 0.0
        %1390 = vmatpush1.msra.mxu0 0.0
        %1391 = vmatprep.subr.mxu0 0.0
        %1392 = vmatpush1.msra.mxu0 0.0
        %1393 = vmatprep.subr.mxu0 0.0
        %1394 = vmatpush1.msra.mxu0 0.0
        %1395 = vmatprep.subr.mxu0 0.0
        %1396 = vmatpush1.msra.mxu0 0.0
        %1397 = vmatprep.subr.mxu0 0.0
        %1398 = vmatpush1.msra.mxu0 0.0
        %1399 = vmatprep.subr.mxu0 0.0
        %1400 = vmatpush1.msra.mxu0 0.0
        %1401 = vmatprep.subr.mxu0 0.0
        %1402 = vmatpush1.msra.mxu0 0.0
        %1403 = vmatprep.subr.mxu0 0.0
        %1404 = vmatpush1.msra.mxu0 0.0
        %1405 = vmatprep.subr.mxu0 0.0
        %1406 = vmatpush1.msra.mxu0 0.0
        %1407 = vmatprep.subr.mxu0 0.0
        %1408 = vmatpush1.msra.mxu0 0.0
        %1409 = vmatprep.subr.mxu0 0.0
        %1410 = vmatpush1.msra.mxu0 0.0
        %1411 = vmatprep.subr.mxu0 0.0
        %1412 = vmatpush1.msra.mxu0 0.0
        %1413 = vmatprep.subr.mxu0 0.0
        %1414 = vmatpush1.msra.mxu0 0.0
        %1415 = vmatprep.subr.mxu0 0.0
        %1416 = vmatpush1.msra.mxu0 0.0
        %1417 = vmatprep.subr.mxu0 0.0
        %1418 = vmatpush1.msra.mxu0 0.0
        %1419 = vmatprep.subr.mxu0 0.0
        %1420 = vmatpush1.msra.mxu0 0.0
        %1421 = vmatprep.subr.mxu0 0.0
        %1422 = vmatpush1.msra.mxu0 0.0
        %1423 = vmatprep.subr.mxu0 0.0
        %1424 = vmatpush1.msra.mxu0 0.0
        %1425 = vmatprep.subr.mxu0 0.0
        %1426 = vmatpush1.msra.mxu0 0.0
        %1427 = vmatprep.mubr.f32.mxu0 0.0
        %1428 = vmatmul.mubr.f32.gmra.mrb[0].mxu0 %v1361
        %v1429 = vpop.f32.mrb[0].mxu0
        %v1430 = vadd.f32 0.0, %v1429
        %v1431 = vpop.f32.mrb[0].mxu0
        %1432 = vdwg.mxu0
        %1433 = vst.msk [vmem:[#allocation3 + $0x8] sm:$0xff] %vm936, %v1430
        %1434 = vrot.lane.b32.xlu0 %v776, 96
        %v1435 = vpop.permute.xlu0 %1434
        %1436 = vrot.lane.b32.xlu0 %v853, 96
        %v1437 = vpop.permute.xlu0 %1436
        %v1438 = vsel %vm936, %v1435, 0
        %v1440 = vsel %vm936, %v1437, 0
        %1442 = vmatprep.subr.mxu0 0.0
        %1443 = vmatpush1.xpose.msra.mxu0 %v1440
        %1444 = vmatprep.subr.mxu0 0.0
        %1445 = vmatpush1.xpose.msra.mxu0 0.0
        %1446 = vmatprep.subr.mxu0 0.0
        %1447 = vmatpush1.xpose.msra.mxu0 0.0
        %1448 = vmatprep.subr.mxu0 0.0
        %1449 = vmatpush1.xpose.msra.mxu0 0.0
        %1450 = vmatprep.subr.mxu0 0.0
        %1451 = vmatpush1.xpose.msra.mxu0 0.0
        %1452 = vmatprep.subr.mxu0 0.0
        %1453 = vmatpush1.xpose.msra.mxu0 0.0
        %1454 = vmatprep.subr.mxu0 0.0
        %1455 = vmatpush1.xpose.msra.mxu0 0.0
        %1456 = vmatprep.subr.mxu0 0.0
        %1457 = vmatpush1.xpose.msra.mxu0 0.0
        %1458 = vmatprep.subr.mxu0 0.0
        %1459 = vmatpush1.xpose.msra.mxu0 0.0
        %1460 = vmatprep.subr.mxu0 0.0
        %1461 = vmatpush1.xpose.msra.mxu0 0.0
        %1462 = vmatprep.subr.mxu0 0.0
        %1463 = vmatpush1.xpose.msra.mxu0 0.0
        %1464 = vmatprep.subr.mxu0 0.0
        %1465 = vmatpush1.xpose.msra.mxu0 0.0
        %1466 = vmatprep.subr.mxu0 0.0
        %1467 = vmatpush1.xpose.msra.mxu0 0.0
        %1468 = vmatprep.subr.mxu0 0.0
        %1469 = vmatpush1.xpose.msra.mxu0 0.0
        %1470 = vmatprep.subr.mxu0 0.0
        %1471 = vmatpush1.xpose.msra.mxu0 0.0
        %1472 = vmatprep.subr.mxu0 0.0
        %1473 = vmatpush1.xpose.msra.mxu0 0.0
        %1474 = vmatprep.subr.mxu0 0.0
        %1475 = vmatpush1.xpose.msra.mxu0 0.0
        %1476 = vmatprep.subr.mxu0 0.0
        %1477 = vmatpush1.xpose.msra.mxu0 0.0
        %1478 = vmatprep.subr.mxu0 0.0
        %1479 = vmatpush1.xpose.msra.mxu0 0.0
        %1480 = vmatprep.subr.mxu0 0.0
        %1481 = vmatpush1.xpose.msra.mxu0 0.0
        %1482 = vmatprep.subr.mxu0 0.0
        %1483 = vmatpush1.xpose.msra.mxu0 0.0
        %1484 = vmatprep.subr.mxu0 0.0
        %1485 = vmatpush1.xpose.msra.mxu0 0.0
        %1486 = vmatprep.subr.mxu0 0.0
        %1487 = vmatpush1.xpose.msra.mxu0 0.0
        %1488 = vmatprep.subr.mxu0 0.0
        %1489 = vmatpush1.xpose.msra.mxu0 0.0
        %1490 = vmatprep.subr.mxu0 0.0
        %1491 = vmatpush1.xpose.msra.mxu0 0.0
        %1492 = vmatprep.subr.mxu0 0.0
        %1493 = vmatpush1.xpose.msra.mxu0 0.0
        %1494 = vmatprep.subr.mxu0 0.0
        %1495 = vmatpush1.xpose.msra.mxu0 0.0
        %1496 = vmatprep.subr.mxu0 0.0
        %1497 = vmatpush1.xpose.msra.mxu0 0.0
        %1498 = vmatprep.subr.mxu0 0.0
        %1499 = vmatpush1.xpose.msra.mxu0 0.0
        %1500 = vmatprep.subr.mxu0 0.0
        %1501 = vmatpush1.xpose.msra.mxu0 0.0
        %1502 = vmatprep.subr.mxu0 0.0
        %1503 = vmatpush1.xpose.msra.mxu0 0.0
        %1504 = vmatprep.subr.mxu0 0.0
        %1505 = vmatpush1.xpose.msra.mxu0 0.0
        %1506 = vmatprep.mubr.f32.mxu0 0.0
        %1507 = vmatmul.mubr.f32.gmra.mrb[0].mxu0 %v1438
        %v1508 = vpop.f32.mrb[0].mxu0
        %v1509 = vadd.f32 %v1272, %v1508
        %v1510 = vpop.f32.mrb[0].mxu0
        %1511 = vdwg.mxu0
        %v1512 = vsel %vm1013, %v1509, -inf
        %1513 = vmax.xlane.f32.xlu0 %v1512
        %v1514 = vpop.xlane.xlu0 %1513
        %v1515 = vsub.f32 %v1509, %v1514
        %v1516 = vmul.f32 %v1515, 1.442695
        %v1517 = vpow.pop %v1516
        %v1518 = vsel %vm1013, %v1517, 0.0
        %1519 = vadd.xlane.f32.xlu0 %v1518
        %v1520 = vpop.xlane.xlu0 %1519
        %v1521 = vrcp.pop %v1520
        %v1522 = vmul.f32 %v1517, %v1521
        %1524 = vrot.lane.b32.xlu0 %v932, 96
        %v1525 = vpop.permute.xlu0 %1524
        %v1528 = vsel %vm1013, %v1522, 0
        %1530 = vmatprep.subr.mxu0 0.0
        %1531 = vmatpush1.msra.mxu0 %v1525
        %1532 = vmatprep.subr.mxu0 0.0
        %1533 = vmatpush1.msra.mxu0 0.0
        %1534 = vmatprep.subr.mxu0 0.0
        %1535 = vmatpush1.msra.mxu0 0.0
        %1536 = vmatprep.subr.mxu0 0.0
        %1537 = vmatpush1.msra.mxu0 0.0
        %1538 = vmatprep.subr.mxu0 0.0
        %1539 = vmatpush1.msra.mxu0 0.0
        %1540 = vmatprep.subr.mxu0 0.0
        %1541 = vmatpush1.msra.mxu0 0.0
        %1542 = vmatprep.subr.mxu0 0.0
        %1543 = vmatpush1.msra.mxu0 0.0
        %1544 = vmatprep.subr.mxu0 0.0
        %1545 = vmatpush1.msra.mxu0 0.0
        %1546 = vmatprep.subr.mxu0 0.0
        %1547 = vmatpush1.msra.mxu0 0.0
        %1548 = vmatprep.subr.mxu0 0.0
        %1549 = vmatpush1.msra.mxu0 0.0
        %1550 = vmatprep.subr.mxu0 0.0
        %1551 = vmatpush1.msra.mxu0 0.0
        %1552 = vmatprep.subr.mxu0 0.0
        %1553 = vmatpush1.msra.mxu0 0.0
        %1554 = vmatprep.subr.mxu0 0.0
        %1555 = vmatpush1.msra.mxu0 0.0
        %1556 = vmatprep.subr.mxu0 0.0
        %1557 = vmatpush1.msra.mxu0 0.0
        %1558 = vmatprep.subr.mxu0 0.0
        %1559 = vmatpush1.msra.mxu0 0.0
        %1560 = vmatprep.subr.mxu0 0.0
        %1561 = vmatpush1.msra.mxu0 0.0
        %1562 = vmatprep.subr.mxu0 0.0
        %1563 = vmatpush1.msra.mxu0 0.0
        %1564 = vmatprep.subr.mxu0 0.0
        %1565 = vmatpush1.msra.mxu0 0.0
        %1566 = vmatprep.subr.mxu0 0.0
        %1567 = vmatpush1.msra.mxu0 0.0
        %1568 = vmatprep.subr.mxu0 0.0
        %1569 = vmatpush1.msra.mxu0 0.0
        %1570 = vmatprep.subr.mxu0 0.0
        %1571 = vmatpush1.msra.mxu0 0.0
        %1572 = vmatprep.subr.mxu0 0.0
        %1573 = vmatpush1.msra.mxu0 0.0
        %1574 = vmatprep.subr.mxu0 0.0
        %1575 = vmatpush1.msra.mxu0 0.0
        %1576 = vmatprep.subr.mxu0 0.0
        %1577 = vmatpush1.msra.mxu0 0.0
        %1578 = vmatprep.subr.mxu0 0.0
        %1579 = vmatpush1.msra.mxu0 0.0
        %1580 = vmatprep.subr.mxu0 0.0
        %1581 = vmatpush1.msra.mxu0 0.0
        %1582 = vmatprep.subr.mxu0 0.0
        %1583 = vmatpush1.msra.mxu0 0.0
        %1584 = vmatprep.subr.mxu0 0.0
        %1585 = vmatpush1.msra.mxu0 0.0
        %1586 = vmatprep.subr.mxu0 0.0
        %1587 = vmatpush1.msra.mxu0 0.0
        %1588 = vmatprep.subr.mxu0 0.0
        %1589 = vmatpush1.msra.mxu0 0.0
        %1590 = vmatprep.subr.mxu0 0.0
        %1591 = vmatpush1.msra.mxu0 0.0
        %1592 = vmatprep.subr.mxu0 0.0
        %1593 = vmatpush1.msra.mxu0 0.0
        %1594 = vmatprep.mubr.f32.mxu0 0.0
        %1595 = vmatmul.mubr.f32.gmra.mrb[0].mxu0 %v1528
        %v1596 = vpop.f32.mrb[0].mxu0
        %v1597 = vadd.f32 0.0, %v1596
        %v1598 = vpop.f32.mrb[0].mxu0
        %1599 = vdwg.mxu0
        %1601 = vrot.lane.b32.xlu0 %v1597, 32
        %v1602 = vpop.permute.xlu0 %1601
        %1604 = vst.msk [vmem:[#allocation3 + $0x8] sm:$0xff] %vm1269, %v1602
        %v1605 = vld [vmem:[#allocation3] sm:$0xff]
        %v1606 = vld [vmem:[#allocation3 + $0x8] sm:$0xff]
        %v1607 = vlaneseq
        %v1608 = vshrl.u32 %v1607, 7
        %v1609 = vsub.s32 3, %v1608
        %v1610 = vrot.slane %v649, %v1609
        %v1612 = vsel %vm650, %v1605, 0
        %v1615 = vsel %vm650, %v1606, 0
        %1617 = vmatprep.subr.mxu0 0.0
        %1618 = vmatpush1.msra.mxu0 %v641
        %1619 = vmatprep.subr.mxu0 0.0
        %1620 = vmatpush1.msra.mxu0 %v642
        %1621 = vmatprep.subr.mxu0 0.0
        %1622 = vmatpush1.msra.mxu0 %v643
        %1623 = vmatprep.subr.mxu0 0.0
        %1624 = vmatpush1.msra.mxu0 %v644
        %1625 = vmatprep.subr.mxu0 0.0
        %1626 = vmatpush1.msra.mxu0 %v645
        %1627 = vmatprep.subr.mxu0 0.0
        %1628 = vmatpush1.msra.mxu0 %v646
        %1629 = vmatprep.subr.mxu0 0.0
        %1630 = vmatpush1.msra.mxu0 %v647
        %1631 = vmatprep.subr.mxu0 0.0
        %1632 = vmatpush1.msra.mxu0 %v648
        %1633 = vmatprep.subr.mxu0 0.0
        %1634 = vmatpush1.msra.mxu0 0.0
        %1635 = vmatprep.subr.mxu0 0.0
        %1636 = vmatpush1.msra.mxu0 0.0
        %1637 = vmatprep.subr.mxu0 0.0
        %1638 = vmatpush1.msra.mxu0 0.0
        %1639 = vmatprep.subr.mxu0 0.0
        %1640 = vmatpush1.msra.mxu0 0.0
        %1641 = vmatprep.subr.mxu0 0.0
        %1642 = vmatpush1.msra.mxu0 0.0
        %1643 = vmatprep.subr.mxu0 0.0
        %1644 = vmatpush1.msra.mxu0 0.0
        %1645 = vmatprep.subr.mxu0 0.0
        %1646 = vmatpush1.msra.mxu0 0.0
        %1647 = vmatprep.subr.mxu0 0.0
        %1648 = vmatpush1.msra.mxu0 0.0
        %1649 = vmatprep.subr.mxu0 0.0
        %1650 = vmatpush1.msra.mxu0 0.0
        %1651 = vmatprep.subr.mxu0 0.0
        %1652 = vmatpush1.msra.mxu0 0.0
        %1653 = vmatprep.subr.mxu0 0.0
        %1654 = vmatpush1.msra.mxu0 0.0
        %1655 = vmatprep.subr.mxu0 0.0
        %1656 = vmatpush1.msra.mxu0 0.0
        %1657 = vmatprep.subr.mxu0 0.0
        %1658 = vmatpush1.msra.mxu0 0.0
        %1659 = vmatprep.subr.mxu0 0.0
        %1660 = vmatpush1.msra.mxu0 0.0
        %1661 = vmatprep.subr.mxu0 0.0
        %1662 = vmatpush1.msra.mxu0 0.0
        %1663 = vmatprep.subr.mxu0 0.0
        %1664 = vmatpush1.msra.mxu0 0.0
        %1665 = vmatprep.subr.mxu0 0.0
        %1666 = vmatpush1.msra.mxu0 0.0
        %1667 = vmatprep.subr.mxu0 0.0
        %1668 = vmatpush1.msra.mxu0 0.0
        %1669 = vmatprep.subr.mxu0 0.0
        %1670 = vmatpush1.msra.mxu0 0.0
        %1671 = vmatprep.subr.mxu0 0.0
        %1672 = vmatpush1.msra.mxu0 0.0
        %1673 = vmatprep.subr.mxu0 0.0
        %1674 = vmatpush1.msra.mxu0 0.0
        %1675 = vmatprep.subr.mxu0 0.0
        %1676 = vmatpush1.msra.mxu0 0.0
        %1677 = vmatprep.subr.mxu0 0.0
        %1678 = vmatpush1.msra.mxu0 0.0
        %1679 = vmatprep.subr.mxu0 0.0
        %1680 = vmatpush1.msra.mxu0 0.0
        %1681 = vmatprep.mubr.f32.mxu0 0.0
        %1682 = vmatmul.mubr.f32.gmra.mrb[0].mxu0 %v1612
        %v1683 = vpop.f32.mrb[0].mxu0
        %v1684 = vadd.f32 %v1610, %v1683
        %v1685 = vpop.f32.mrb[0].mxu0
        %1686 = vmatprep.mubr.f32.mxu0 0.0
        %1687 = vmatmul.mubr.f32.gmra.mrb[0].mxu0 %v1615
        %v1688 = vpop.f32.mrb[0].mxu0
        %v1689 = vadd.f32 %v1610, %v1688
        %v1690 = vpop.f32.mrb[0].mxu0
        %1691 = vdwg.mxu0
        %v1692 = vadd.f32 %v1684, %v688
        %v1693 = vadd.f32 %v1689, %v689
        %v1694 = vsel %vm650, %v1692, 0.0
        %1695 = vadd.xlane.f32.xlu0 %v1694
        %v1696 = vpop.xlane.xlu0 %1695
        %v1697 = vsel %vm650, %v1693, 0.0
        %1698 = vadd.xlane.f32.xlu0 %v1697
        %v1699 = vpop.xlane.xlu0 %1698
        %v1700 = vmul.f32 %v1696, %v657
        %v1701 = vmul.f32 %v1699, %v657
        %v1702 = vsub.f32 %v1692, %v1700
        %v1703 = vsub.f32 %v1693, %v1701
        %v1704 = vmul.f32 %v1702, %v1702
        %v1705 = vmul.f32 %v1703, %v1703
        %v1706 = vsel %vm650, %v1704, 0.0
        %1707 = vadd.xlane.f32.xlu0 %v1706
        %v1708 = vpop.xlane.xlu0 %1707
        %v1709 = vsel %vm650, %v1705, 0.0
        %1710 = vadd.xlane.f32.xlu0 %v1709
        %v1711 = vpop.xlane.xlu0 %1710
        %v1712 = vmul.f32 %v1708, %v657
        %v1713 = vmul.f32 %v1711, %v657
        %v1714 = vadd.f32 %v1712, 1e-12
        %v1715 = vadd.f32 %v1713, 1e-12
        %v1716 = vrsqrt.pop %v1714
        %v1717 = vrsqrt.pop %v1715
        %v1718 = vmul.f32 %v1702, %v1716
        %v1719 = vmul.f32 %v1703, %v1717
        %v1720 = vlaneseq
        %v1721 = vshrl.u32 %v1720, 7
        %v1722 = vsub.s32 1, %v1721
        %v1723 = vrot.slane %v615, %v1722
        %v1724 = vmul.f32 %v1718, %v1723
        %v1725 = vmul.f32 %v1719, %v1723
        %v1726 = vlaneseq
        %v1727 = vshrl.u32 %v1726, 7
        %v1728 = vsub.s32 1, %v1727
        %v1729 = vrot.slane %v616, %v1728
        %v1730 = vadd.f32 %v1724, %v1729
        %v1731 = vadd.f32 %v1725, %v1729
        %v1732 = vadd.f32 %v1730, %v613
        %v1733 = vadd.f32 %v1731, %v614
        %v1734 = vsel %vm650, %v1732, 0.0
        %1735 = vadd.xlane.f32.xlu0 %v1734
        %v1736 = vpop.xlane.xlu0 %1735
        %v1737 = vsel %vm650, %v1733, 0.0
        %1738 = vadd.xlane.f32.xlu0 %v1737
        %v1739 = vpop.xlane.xlu0 %1738
        %v1740 = vmul.f32 %v1736, %v657
        %v1741 = vmul.f32 %v1739, %v657
        %v1742 = vsub.f32 %v1732, %v1740
        %v1743 = vsub.f32 %v1733, %v1741
        %v1744 = vmul.f32 %v1742, %v1742
        %v1745 = vmul.f32 %v1743, %v1743
        %v1746 = vsel %vm650, %v1744, 0.0
        %1747 = vadd.xlane.f32.xlu0 %v1746
        %v1748 = vpop.xlane.xlu0 %1747
        %v1749 = vsel %vm650, %v1745, 0.0
        %1750 = vadd.xlane.f32.xlu0 %v1749
        %v1751 = vpop.xlane.xlu0 %1750
        %v1752 = vmul.f32 %v1748, %v657
        %v1753 = vmul.f32 %v1751, %v657
        %v1754 = vadd.f32 %v1752, 1e-12
        %v1755 = vadd.f32 %v1753, 1e-12
        %v1756 = vrsqrt.pop %v1754
        %v1757 = vrsqrt.pop %v1755
        %v1758 = vmul.f32 %v1742, %v1756
        %v1759 = vmul.f32 %v1743, %v1757
        %v1760 = vlaneseq
        %v1761 = vshrl.u32 %v1760, 7
        %v1762 = vsub.s32 2, %v1761
        %v1763 = vrot.slane %v615, %v1762
        %v1764 = vmul.f32 %v1758, %v1763
        %v1765 = vmul.f32 %v1759, %v1763
        %v1766 = vlaneseq
        %v1767 = vshrl.u32 %v1766, 7
        %v1768 = vsub.s32 2, %v1767
        %v1769 = vrot.slane %v616, %v1768
        %v1770 = vadd.f32 %v1764, %v1769
        %v1771 = vadd.f32 %v1765, %v1769
        %v1772 = vld [vmem:[%s590] sm:$0xff]
        %v1773 = vld [vmem:[%s590 + $0x8] sm:$0xff]
        %v1774 = vld [vmem:[%s590 + $0x10] sm:$0xff]
        %v1775 = vld [vmem:[%s590 + $0x18] sm:$0xff]
        %v1776 = vld [vmem:[%s590 + $0x20] sm:$0xff]
        %v1777 = vld [vmem:[%s590 + $0x28] sm:$0xff]
        %v1778 = vld [vmem:[%s590 + $0x30] sm:$0xff]
        %v1779 = vld [vmem:[%s590 + $0x38] sm:$0xff]
        %v1780 = vld [vmem:[%s590 + $0x40] sm:$0xff]
        %v1781 = vld [vmem:[%s590 + $0x48] sm:$0xff]
        %v1782 = vld [vmem:[%s590 + $0x50] sm:$0xff]
        %v1783 = vld [vmem:[%s590 + $0x58] sm:$0xff]
        %v1784 = vld [vmem:[%s590 + $0x60] sm:$0xff]
        %v1785 = vld [vmem:[%s590 + $0x68] sm:$0xff]
        %v1786 = vld [vmem:[%s590 + $0x70] sm:$0xff]
        %v1787 = vld [vmem:[%s590 + $0x78] sm:$0xff]
        %v1788 = vld [vmem:[%s594] sm:$0x3]
        %v1790 = vlaneseq
        %v1791 = vshrl.u32 %v1790, 7
        %v1792 = vsub.s32 0, %v1791
        %v1793 = vrot.slane %v1788, %v1792
        %v1794 = vlaneseq
        %v1795 = vshrl.u32 %v1794, 7
        %v1796 = vsub.s32 1, %v1795
        %v1797 = vrot.slane %v1788, %v1796
        %v1801 = vsel %vm650, %v1770, 0
        %v1804 = vsel %vm650, %v1771, 0
        %1806 = vmatprep.subr.mxu0 %v1773
        %1807 = vmatpush1.msra.mxu0 %v1772
        %1808 = vmatprep.subr.mxu0 %v1775
        %1809 = vmatpush1.msra.mxu0 %v1774
        %1810 = vmatprep.subr.mxu0 %v1777
        %1811 = vmatpush1.msra.mxu0 %v1776
        %1812 = vmatprep.subr.mxu0 %v1779
        %1813 = vmatpush1.msra.mxu0 %v1778
        %1814 = vmatprep.subr.mxu0 %v1781
        %1815 = vmatpush1.msra.mxu0 %v1780
        %1816 = vmatprep.subr.mxu0 %v1783
        %1817 = vmatpush1.msra.mxu0 %v1782
        %1818 = vmatprep.subr.mxu0 %v1785
        %1819 = vmatpush1.msra.mxu0 %v1784
        %1820 = vmatprep.subr.mxu0 %v1787
        %1821 = vmatpush1.msra.mxu0 %v1786
        %1822 = vmatprep.subr.mxu0 0.0
        %1823 = vmatpush1.msra.mxu0 0.0
        %1824 = vmatprep.subr.mxu0 0.0
        %1825 = vmatpush1.msra.mxu0 0.0
        %1826 = vmatprep.subr.mxu0 0.0
        %1827 = vmatpush1.msra.mxu0 0.0
        %1828 = vmatprep.subr.mxu0 0.0
        %1829 = vmatpush1.msra.mxu0 0.0
        %1830 = vmatprep.subr.mxu0 0.0
        %1831 = vmatpush1.msra.mxu0 0.0
        %1832 = vmatprep.subr.mxu0 0.0
        %1833 = vmatpush1.msra.mxu0 0.0
        %1834 = vmatprep.subr.mxu0 0.0
        %1835 = vmatpush1.msra.mxu0 0.0
        %1836 = vmatprep.subr.mxu0 0.0
        %1837 = vmatpush1.msra.mxu0 0.0
        %1838 = vmatprep.subr.mxu0 0.0
        %1839 = vmatpush1.msra.mxu0 0.0
        %1840 = vmatprep.subr.mxu0 0.0
        %1841 = vmatpush1.msra.mxu0 0.0
        %1842 = vmatprep.subr.mxu0 0.0
        %1843 = vmatpush1.msra.mxu0 0.0
        %1844 = vmatprep.subr.mxu0 0.0
        %1845 = vmatpush1.msra.mxu0 0.0
        %1846 = vmatprep.subr.mxu0 0.0
        %1847 = vmatpush1.msra.mxu0 0.0
        %1848 = vmatprep.subr.mxu0 0.0
        %1849 = vmatpush1.msra.mxu0 0.0
        %1850 = vmatprep.subr.mxu0 0.0
        %1851 = vmatpush1.msra.mxu0 0.0
        %1852 = vmatprep.subr.mxu0 0.0
        %1853 = vmatpush1.msra.mxu0 0.0
        %1854 = vmatprep.subr.mxu0 0.0
        %1855 = vmatpush1.msra.mxu0 0.0
        %1856 = vmatprep.subr.mxu0 0.0
        %1857 = vmatpush1.msra.mxu0 0.0
        %1858 = vmatprep.subr.mxu0 0.0
        %1859 = vmatpush1.msra.mxu0 0.0
        %1860 = vmatprep.subr.mxu0 0.0
        %1861 = vmatpush1.msra.mxu0 0.0
        %1862 = vmatprep.subr.mxu0 0.0
        %1863 = vmatpush1.msra.mxu0 0.0
        %1864 = vmatprep.subr.mxu0 0.0
        %1865 = vmatpush1.msra.mxu0 0.0
        %1866 = vmatprep.subr.mxu0 0.0
        %1867 = vmatpush1.msra.mxu0 0.0
        %1868 = vmatprep.subr.mxu0 0.0
        %1869 = vmatpush1.msra.mxu0 0.0
        %1870 = vmatprep.mubr.f32.mxu0 0.0
        %1871 = vmatmul.mubr.f32.gmra.mrb[0].mxu0 %v1801
        %v1872 = vpop.f32.mrb[0].mxu0
        %v1873 = vadd.f32 %v1793, %v1872
        %v1874 = vpop.f32.mrb[0].mxu0
        %v1875 = vadd.f32 %v1797, %v1874
        %1876 = vmatprep.mubr.f32.mxu0 0.0
        %1877 = vmatmul.mubr.f32.gmra.mrb[0].mxu0 %v1804
        %v1878 = vpop.f32.mrb[0].mxu0
        %v1879 = vadd.f32 %v1793, %v1878
        %v1880 = vpop.f32.mrb[0].mxu0
        %v1881 = vadd.f32 %v1797, %v1880
        %1882 = vdwg.mxu0
        %v1883 = vmul.f32 %v1873, 0.5
        %v1884 = vmul.f32 %v1875, 0.5
        %v1885 = vmul.f32 %v1879, 0.5
        %v1886 = vmul.f32 %v1881, 0.5
        %v1887 = vmul.f32 %v1873, 0.70710677
        %v1888 = vmul.f32 %v1875, 0.70710677
        %v1889 = vmul.f32 %v1879, 0.70710677
        %v1890 = vmul.f32 %v1881, 0.70710677
        %v1891 = verf.f32.pop %v1887
        %v1892 = verf.f32.pop %v1888
        %v1893 = verf.f32.pop %v1889
        %v1894 = verf.f32.pop %v1890
        %v1895 = vadd.f32 %v1891, 1.0
        %v1896 = vadd.f32 %v1892, 1.0
        %v1897 = vadd.f32 %v1893, 1.0
        %v1898 = vadd.f32 %v1894, 1.0
        %v1899 = vmul.f32 %v1883, %v1895
        %v1900 = vmul.f32 %v1884, %v1896
        %v1901 = vmul.f32 %v1885, %v1897
        %v1902 = vmul.f32 %v1886, %v1898
        %v1903 = vld [vmem:[%s599] sm:$0xff]
        %v1904 = vld [vmem:[%s599 + $0x8] sm:$0xff]
        %v1905 = vld [vmem:[%s599 + $0x10] sm:$0xff]
        %v1906 = vld [vmem:[%s599 + $0x18] sm:$0xff]
        %v1907 = vld [vmem:[%s599 + $0x20] sm:$0xff]
        %v1908 = vld [vmem:[%s599 + $0x28] sm:$0xff]
        %v1909 = vld [vmem:[%s599 + $0x30] sm:$0xff]
        %v1910 = vld [vmem:[%s599 + $0x38] sm:$0xff]
        %v1911 = vld [vmem:[%s599 + $0x40] sm:$0xff]
        %v1912 = vld [vmem:[%s599 + $0x48] sm:$0xff]
        %v1913 = vld [vmem:[%s599 + $0x50] sm:$0xff]
        %v1914 = vld [vmem:[%s599 + $0x58] sm:$0xff]
        %v1915 = vld [vmem:[%s599 + $0x60] sm:$0xff]
        %v1916 = vld [vmem:[%s599 + $0x68] sm:$0xff]
        %v1917 = vld [vmem:[%s599 + $0x70] sm:$0xff]
        %v1918 = vld [vmem:[%s599 + $0x78] sm:$0xff]
        %v1919 = vld [vmem:[%s599 + $0x80] sm:$0xff]
        %v1920 = vld [vmem:[%s599 + $0x88] sm:$0xff]
        %v1921 = vld [vmem:[%s599 + $0x90] sm:$0xff]
        %v1922 = vld [vmem:[%s599 + $0x98] sm:$0xff]
        %v1923 = vld [vmem:[%s599 + $0xa0] sm:$0xff]
        %v1924 = vld [vmem:[%s599 + $0xa8] sm:$0xff]
        %v1925 = vld [vmem:[%s599 + $0xb0] sm:$0xff]
        %v1926 = vld [vmem:[%s599 + $0xb8] sm:$0xff]
        %v1927 = vld [vmem:[%s599 + $0xc0] sm:$0xff]
        %v1928 = vld [vmem:[%s599 + $0xc8] sm:$0xff]
        %v1929 = vld [vmem:[%s599 + $0xd0] sm:$0xff]
        %v1930 = vld [vmem:[%s599 + $0xd8] sm:$0xff]
        %v1931 = vld [vmem:[%s599 + $0xe0] sm:$0xff]
        %v1932 = vld [vmem:[%s599 + $0xe8] sm:$0xff]
        %v1933 = vld [vmem:[%s599 + $0xf0] sm:$0xff]
        %v1934 = vld [vmem:[%s599 + $0xf8] sm:$0xff]
        %v1935 = vld [vmem:[%s602] sm:$0x1]
        %v1937 = vlaneseq
        %v1938 = vshrl.u32 %v1937, 7
        %v1939 = vsub.s32 0, %v1938
        %v1940 = vrot.slane %v1935, %v1939
        %1942 = vmatprep.subr.mxu0 0.0
        %1943 = vmatpush1.msra.mxu0 %v1903
        %1944 = vmatprep.subr.mxu0 0.0
        %1945 = vmatpush1.msra.mxu0 %v1904
        %1946 = vmatprep.subr.mxu0 0.0
        %1947 = vmatpush1.msra.mxu0 %v1905
        %1948 = vmatprep.subr.mxu0 0.0
        %1949 = vmatpush1.msra.mxu0 %v1906
        %1950 = vmatprep.subr.mxu0 0.0
        %1951 = vmatpush1.msra.mxu0 %v1907
        %1952 = vmatprep.subr.mxu0 0.0
        %1953 = vmatpush1.msra.mxu0 %v1908
        %1954 = vmatprep.subr.mxu0 0.0
        %1955 = vmatpush1.msra.mxu0 %v1909
        %1956 = vmatprep.subr.mxu0 0.0
        %1957 = vmatpush1.msra.mxu0 %v1910
        %1958 = vmatprep.subr.mxu0 0.0
        %1959 = vmatpush1.msra.mxu0 %v1911
        %1960 = vmatprep.subr.mxu0 0.0
        %1961 = vmatpush1.msra.mxu0 %v1912
        %1962 = vmatprep.subr.mxu0 0.0
        %1963 = vmatpush1.msra.mxu0 %v1913
        %1964 = vmatprep.subr.mxu0 0.0
        %1965 = vmatpush1.msra.mxu0 %v1914
        %1966 = vmatprep.subr.mxu0 0.0
        %1967 = vmatpush1.msra.mxu0 %v1915
        %1968 = vmatprep.subr.mxu0 0.0
        %1969 = vmatpush1.msra.mxu0 %v1916
        %1970 = vmatprep.subr.mxu0 0.0
        %1971 = vmatpush1.msra.mxu0 %v1917
        %1972 = vmatprep.subr.mxu0 0.0
        %1973 = vmatpush1.msra.mxu0 %v1918
        %1974 = vmatprep.subr.mxu0 0.0
        %1975 = vmatpush1.msra.mxu0 %v1919
        %1976 = vmatprep.subr.mxu0 0.0
        %1977 = vmatpush1.msra.mxu0 %v1920
        %1978 = vmatprep.subr.mxu0 0.0
        %1979 = vmatpush1.msra.mxu0 %v1921
        %1980 = vmatprep.subr.mxu0 0.0
        %1981 = vmatpush1.msra.mxu0 %v1922
        %1982 = vmatprep.subr.mxu0 0.0
        %1983 = vmatpush1.msra.mxu0 %v1923
        %1984 = vmatprep.subr.mxu0 0.0
        %1985 = vmatpush1.msra.mxu0 %v1924
        %1986 = vmatprep.subr.mxu0 0.0
        %1987 = vmatpush1.msra.mxu0 %v1925
        %1988 = vmatprep.subr.mxu0 0.0
        %1989 = vmatpush1.msra.mxu0 %v1926
        %1990 = vmatprep.subr.mxu0 0.0
        %1991 = vmatpush1.msra.mxu0 %v1927
        %1992 = vmatprep.subr.mxu0 0.0
        %1993 = vmatpush1.msra.mxu0 %v1928
        %1994 = vmatprep.subr.mxu0 0.0
        %1995 = vmatpush1.msra.mxu0 %v1929
        %1996 = vmatprep.subr.mxu0 0.0
        %1997 = vmatpush1.msra.mxu0 %v1930
        %1998 = vmatprep.subr.mxu0 0.0
        %1999 = vmatpush1.msra.mxu0 %v1931
        %2000 = vmatprep.subr.mxu0 0.0
        %2001 = vmatpush1.msra.mxu0 %v1932
        %2002 = vmatprep.subr.mxu0 0.0
        %2003 = vmatpush1.msra.mxu0 %v1933
        %2004 = vmatprep.subr.mxu0 0.0
        %2005 = vmatpush1.msra.mxu0 %v1934
        %2006 = vmatprep.mubr.f32.mxu0 %v1900
        %2007 = vmatmul.mubr.f32.gmra.mrb[0].mxu0 %v1899
        %v2008 = vpop.f32.mrb[0].mxu0
        %v2009 = vadd.f32 %v1940, %v2008
        %v2010 = vpop.f32.mrb[0].mxu0
        %2011 = vmatprep.mubr.f32.mxu0 %v1902
        %2012 = vmatmul.mubr.f32.gmra.mrb[0].mxu0 %v1901
        %v2013 = vpop.f32.mrb[0].mxu0
        %v2014 = vadd.f32 %v1940, %v2013
        %v2015 = vpop.f32.mrb[0].mxu0
        %2016 = vdwg.mxu0
        %v2017 = vadd.f32 %v2009, %v1770
        %v2018 = vadd.f32 %v2014, %v1771
        %v2019 = vsel %vm650, %v2017, 0.0
        %2020 = vadd.xlane.f32.xlu0 %v2019
        %v2021 = vpop.xlane.xlu0 %2020
        %v2022 = vsel %vm650, %v2018, 0.0
        %2023 = vadd.xlane.f32.xlu0 %v2022
        %v2024 = vpop.xlane.xlu0 %2023
        %v2025 = vmul.f32 %v2021, %v657
        %v2026 = vmul.f32 %v2024, %v657
        %v2027 = vsub.f32 %v2017, %v2025
        %v2028 = vsub.f32 %v2018, %v2026
        %v2029 = vmul.f32 %v2027, %v2027
        %v2030 = vmul.f32 %v2028, %v2028
        %v2031 = vsel %vm650, %v2029, 0.0
        %2032 = vadd.xlane.f32.xlu0 %v2031
        %v2033 = vpop.xlane.xlu0 %2032
        %v2034 = vsel %vm650, %v2030, 0.0
        %2035 = vadd.xlane.f32.xlu0 %v2034
        %v2036 = vpop.xlane.xlu0 %2035
        %v2037 = vmul.f32 %v2033, %v657
        %v2038 = vmul.f32 %v2036, %v657
        %v2039 = vadd.f32 %v2037, 1e-12
        %v2040 = vadd.f32 %v2038, 1e-12
        %v2041 = vrsqrt.pop %v2039
        %v2042 = vrsqrt.pop %v2040
        %v2043 = vmul.f32 %v2027, %v2041
        %v2044 = vmul.f32 %v2028, %v2042
        %v2045 = vlaneseq
        %v2046 = vshrl.u32 %v2045, 7
        %v2047 = vsub.s32 3, %v2046
        %v2048 = vrot.slane %v615, %v2047
        %v2049 = vmul.f32 %v2043, %v2048
        %v2050 = vmul.f32 %v2044, %v2048
        %v2051 = vlaneseq
        %v2052 = vshrl.u32 %v2051, 7
        %v2053 = vsub.s32 3, %v2052
        %v2054 = vrot.slane %v616, %v2053
        %v2055 = vadd.f32 %v2049, %v2054
        %v2056 = vadd.f32 %v2050, %v2054
        %v2057 = vadd.f32 %v2055, %v1732
        %v2058 = vadd.f32 %v2056, %v1733
        %2059 = vst.msk [vmem:[#allocation2] sm:$0xff] %vm650, %v2057
        %2060 = vst.msk [vmem:[#allocation2 + $0x8] sm:$0xff] %vm650, %v2058
        %2061 = vst.msk [vmem:[%s574] sm:$0xff] %vm650, %v2057
        %2062 = vst.msk [vmem:[%s574 + $0x8] sm:$0xff] %vm650, %v2058
        %s2063 = sand.u32 %s330, 1
        %s2064 = scalar_lea.sflag [#allocation6], %s2063
        %s2065 = sand.u32 %s330, 1
        %s2066 = smul.addr %s2065, 16
        %s2067 = scalar_lea.vmem [#allocation11], %s2066
        // Predicated region
        $region85: #{tpu_custom_call.1} parent=63 // pred_check
          %p2068 = pneg %p340
        $region86: #{tpu_custom_call.1} parent=63 // pred_check_branch
          %2070 = sbr.rel (%p2068) target = $region88
        $region87: #{tpu_custom_call.1} parent=63 // pred_region
          %s2071 = smul.u32 2, %s31
          %s2073 = ssub.s32 256, 256
          %2074 = vsyncadd %s2064, %s2073
          %s2075 = smul.addr %s2071, 2
          %s2076 = sadd.s32 %s32, %s2075
          %s2077 = smul.addr %s2076, 128
          %s2078 = scalar_lea.hbm %s11, %s2077
          %s2079 = sshll.u32 %s2067, 4
          %s2080 = int_to_ptr.vmem [resolvable:$true] %s2079
          %2085 = dma.vmem_to_hbm [thread:$0]  %s2080, 256, %s2078, %s2064, 128, 256, 8
        $region88: #{tpu_custom_call.1} parent=63 // pred_fallthru
          _
      $region64: #{tpu_custom_call.1} parent=5 // pred_fallthru
        _
      %p2086 = scmp.le.s32.totalorder 2, %s22
      // Predicated region
      $region89: #{tpu_custom_call.1} parent=5 // pred_check
        %p2087 = pneg %p2086
      $region90: #{tpu_custom_call.1} parent=5 // pred_check_branch
        %2089 = sbr.rel (%p2087) target = $region92
      $region91: #{tpu_custom_call.1} parent=5 // pred_region
        %s2090 = ssub.s32 %s22, 2
        // Predicated region
        $region93: #{tpu_custom_call.1} parent=91 // pred_check
          %p2091 = pneg %p346
        $region94: #{tpu_custom_call.1} parent=91 // pred_check_branch
          %2093 = sbr.rel (%p2091) target = $region96
        $region95: #{tpu_custom_call.1} parent=91 // pred_region
          %s2094 = sand.u32 %s331, 1
          %s2095 = scalar_lea.sflag [#allocation6], %s2094
          %s2096 = sand.u32 %s331, 1
          %s2097 = smul.addr %s2096, 16
          %s2098 = scalar_lea.vmem [#allocation11], %s2097
          %2099 = dma.done %s2095, 256
        $region96: #{tpu_custom_call.1} parent=91 // pred_fallthru
          _
      $region92: #{tpu_custom_call.1} parent=5 // pred_fallthru
        _
    $region6: #{tpu_custom_call.1} parent=1 // loop_footer
      %s26 = sadd.s32 1, %s22
    $region7: #{tpu_custom_call.1} parent=1 // loop_footer_branch
      %21 = sbr.rel target = $region3
    $region8: #{tpu_custom_call.1} parent=1 // loop_exit
      _
    %2100 = vsyncpa [#allocation5], 1
    %s2101 = scalar_lea.sflag [#allocation5], 1
    %2102 = vsyncpa %s2101, 1
    %2103 = vsyncpa [#allocation8], 1
    %2104 = vsyncpa [#allocation6], 1
    %s2105 = scalar_lea.sflag [#allocation6], 1
    %2106 = vsyncpa %s2105, 1

</llo_original>
